<compile_context>
chip_gen: v5e
topology: v5e:2x2
jax: 0.10.0
libtpu: 0.0.40
codegen_flags: <defaults>
</compile_context>

<pallas_src>
import functools

import jax
import jax.numpy as jnp
from jax import lax
from jax.experimental import pallas as pl
from jax.experimental.pallas import tpu as pltpu


def _conv_block_kernel(x_ref, mask_ref, *rest, num_layers, k, We, TH):
    """Fused L x [conv kxk ('same', high-side pad) + bias + ReLU] on one tile."""
    w_refs = [rest[2 * l] for l in range(num_layers)]
    b_refs = [rest[2 * l + 1] for l in range(num_layers)]
    o_ref = rest[2 * num_layers]
    scratch = rest[2 * num_layers + 1:]

    offs = tuple(ky * We + kx for ky in range(k) for kx in range(k))

    src = x_ref
    for l in range(num_layers):
        w_ref, b_ref = w_refs[l], b_refs[l]
        rows_out = TH + (num_layers - 1 - l) * (k - 1)
        m = rows_out * We

        # im2col along lanes in VMEM -> single MXU dot, K = k*k*Cin_l.
        xcat = jnp.concatenate([src[pl.ds(o, m), :] for o in offs], axis=1)
        acc = jnp.dot(xcat, w_ref[...], preferred_element_type=jnp.float32)
        acc = jnp.maximum(acc + b_ref[...], 0.0)

        if l + 1 < num_layers:
            # Zero the 'same'-padding positions (x >= W, rows past the image)
            # so the next layer sees exact zeros there.
            acc = acc * mask_ref[pl.ds(0, m), :]
            dst = scratch[l]
            dst[pl.ds(0, m), :] = acc.astype(dst.dtype)
            # Zero the slack tail so the wrap-around halo read of the last
            # padding position is an exact zero (never stale VMEM).
            slack = dst.shape[0] - m
            dst[pl.ds(m, slack), :] = jnp.zeros((slack, dst.shape[1]), dst.dtype)
            src = dst
        else:
            o_ref[...] = acc.astype(o_ref.dtype)


def conv_block_forward(x_nchw, params, *, kernel_size=2, row_tile=64):
    """Fused ConvBlock forward.  x_nchw: (N, Cin, H, W);  params: [(w_OIHW, b)]."""
    L = len(params)
    k = kernel_size
    N, Cin, H, W = x_nchw.shape
    F = params[0][0].shape[0]

    TH = int(min(row_tile, H))              # output rows per tile
    nh = -(-H // TH)                        # cdiv
    Hc = nh * TH
    We = W + (k - 1)                        # extended width ('same' col pad)
    R0 = TH + (L - 1) * (k - 1)             # rows computed by the first layer
    in_rows = R0 + k                        # input rows per tile (halo + slack)
    Cin_pad = max(8, -(-Cin // 8) * 8)      # lane-friendly K; zero channels

    # ---- wrapper-side glue (layout only; no im2col duplication in HBM) ----
    x = jnp.transpose(x_nchw, (0, 2, 3, 1))                      # NCHW -> NHWC
    xp = jnp.pad(x, ((0, 0), (0, (Hc - TH + in_rows) - H),
                     (0, We - W), (0, Cin_pad - Cin)))
    tiles = [xp[:, i * TH:i * TH + in_rows] for i in range(nh)]  # halo dup only
    x_tiles = jnp.stack(tiles, axis=1).reshape(N, nh, in_rows * We, Cin_pad)

    # Per-tile mask of real-image positions in the flattened (row*We) layout.
    g_row = (jnp.arange(nh) * TH)[:, None, None] + jnp.arange(R0)[None, :, None]
    col = jnp.arange(We)[None, None, :]
    mask = ((g_row < H) & (col < W)).astype(jnp.float32).reshape(nh, R0 * We, 1)

    # Weights as (k*k*cin, F) matrices (tap-major, then cin); biases as (1, F).
    w_mats, b_rows = [], []
    for li, (w_oihw, b) in enumerate(params):
        cin_l = w_oihw.shape[1]
        if li == 0 and cin_l != Cin_pad:
            w_oihw = jnp.pad(w_oihw, ((0, 0), (0, Cin_pad - cin_l), (0, 0), (0, 0)))
            cin_l = Cin_pad
        w_mats.append(jnp.transpose(w_oihw, (2, 3, 1, 0)).reshape(k * k * cin_l, F)
                      .astype(jnp.float32))
        b_rows.append(b.reshape(1, F).astype(jnp.float32))

    in_specs = [
        pl.BlockSpec((None, None, in_rows * We, Cin_pad), lambda n, i: (n, i, 0, 0)),
        pl.BlockSpec((None, R0 * We, 1), lambda n, i: (i, 0, 0)),
    ]
    ops = [x_tiles, mask]
    for w_m, b_r in zip(w_mats, b_rows):
        in_specs.append(pl.BlockSpec(w_m.shape, lambda n, i: (0, 0)))   # VMEM-resident
        in_specs.append(pl.BlockSpec(b_r.shape, lambda n, i: (0, 0)))
        ops += [w_m, b_r]

    # Intermediate activations stay in VMEM scratch across the fused layers.
    scratch_shapes = []
    for l in range(L - 1):
        rows_next = TH + (L - 2 - l) * (k - 1)
        scratch_shapes.append(pltpu.VMEM(((rows_next + k) * We, F), jnp.float32))

    flops = 2 * N * Hc * W * sum(k * k * w.shape[0] * 0 + k * k * (w.shape[0] // (k * k)) * F
                                 for w in w_mats)
    bytes_accessed = (x_tiles.size + mask.size + N * nh * TH * We * F) * 4 \
        + sum(w.size + b.size for w, b in zip(w_mats, b_rows)) * 4

    out = pl.pallas_call(
        functools.partial(_conv_block_kernel, num_layers=L, k=k, We=We, TH=TH),
        grid=(N, nh),
        in_specs=in_specs,
        out_specs=pl.BlockSpec((None, None, TH * We, F), lambda n, i: (n, i, 0, 0)),
        out_shape=jax.ShapeDtypeStruct((N, nh, TH * We, F), x.dtype),
        scratch_shapes=scratch_shapes,
        compiler_params=pltpu.CompilerParams(
            dimension_semantics=("parallel", "parallel"),
            vmem_limit_bytes=32 * 1024 * 1024),
        cost_estimate=pl.CostEstimate(
            flops=flops, transcendentals=0, bytes_accessed=bytes_accessed),
    )(*ops)

    out = out.reshape(N, Hc, We, F)[:, :H, :W, :]   # drop padding rows/cols
    return jnp.transpose(out, (0, 3, 1, 2))         # NHWC -> NCHW


class ConvBlockPallas:
    """Mirror of the PyTorch ConvBlock: L x [Conv2d(padding='same', k) + ReLU]."""

    def __init__(self, key, in_channels=3, filters=32, layers_per_block=3,
                 kernel_size=2):
        self.kernel_size = kernel_size
        self.in_channels = in_channels
        self.filters = filters
        self.layers_per_block = layers_per_block

        self.params = []  # list of (weight OIHW, bias), like nn.Conv2d
        cin = in_channels
        for _ in range(layers_per_block):
            key, kw, kb = jax.random.split(key, 3)
            fan_in = cin * kernel_size * kernel_size
            bound = 1.0 / jnp.sqrt(fan_in)
            w = jax.random.uniform(
                kw, (filters, cin, kernel_size, kernel_size),
                minval=-bound, maxval=bound, dtype=jnp.float32)
            b = jax.random.uniform(
                kb, (filters,), minval=-bound, maxval=bound, dtype=jnp.float32)
            self.params.append((w, b))
            cin = filters

    def __call__(self, x_nchw, *, row_tile=64):
        return conv_block_forward(x_nchw, self.params,
                                  kernel_size=self.kernel_size,
                                  row_tile=row_tile)


def reference_forward(x_nchw, params, kernel_size):
    """Pure-JAX reference matching PyTorch Conv2d(padding='same') + ReLU."""
    y = x_nchw
    kk = kernel_size
    for w, b in params:
        y = lax.conv_general_dilated(
            y, w, window_strides=(1, 1),
            padding=((0, kk - 1), (0, kk - 1)),
            dimension_numbers=('NCHW', 'OIHW', 'NCHW'))
        y = jax.nn.relu(y + b.reshape(1, -1, 1, 1))
    return y


if __name__ == "__main__":
    key = jax.random.PRNGKey(0)
    key, kx = jax.random.split(key)

    N, C, H, W = 2, 3, 16, 16  # module defaults: in_channels=3
    x = jax.random.normal(kx, (N, C, H, W), dtype=jnp.float32)

    block = ConvBlockPallas(key, in_channels=C, filters=32,
                            layers_per_block=3, kernel_size=2)

    # row_tile=8 -> grid (N=2, row_tiles=2) to exercise the tiled pipeline.
    out = jax.block_until_ready(block(x, row_tile=8))

    ref = jax.block_until_ready(reference_forward(x, block.params,
                                                  block.kernel_size))
    assert out.shape == (N, 32, H, W), out.shape
    err = float(jnp.max(jnp.abs(out - ref)))
    assert jnp.allclose(out, ref, atol=1e-4, rtol=1e-4), err

    print("KERNEL_OK")
</pallas_src>

<mosaic_0001>
module attributes {stable_mosaic.version = 11 : i64} {
  func.func @_conv_block_kernel(%arg0: i32, %arg1: i32, %arg2: memref<1x1x204x8xf32, #tpu.memory_space<vmem>>, %arg3: memref<1x170x1xf32, #tpu.memory_space<vmem>>, %arg4: memref<32x32xf32, #tpu.memory_space<vmem>>, %arg5: memref<1x32xf32, #tpu.memory_space<vmem>>, %arg6: memref<128x32xf32, #tpu.memory_space<vmem>>, %arg7: memref<1x32xf32, #tpu.memory_space<vmem>>, %arg8: memref<128x32xf32, #tpu.memory_space<vmem>>, %arg9: memref<1x32xf32, #tpu.memory_space<vmem>>, %arg10: memref<1x1x136x32xf32, #tpu.memory_space<vmem>>, %arg11: memref<187x32xf32, #tpu.memory_space<vmem>>, %arg12: memref<170x32xf32, #tpu.memory_space<vmem>>) attributes {dimension_semantics = [#tpu.dimension_semantics<parallel>, #tpu.dimension_semantics<parallel>], iteration_bounds = array<i64: 2, 2>, scalar_prefetch = 0 : i64, scratch_operands = 2 : i64, tpu.core_type = #tpu.core_type<tc>, window_params = [{transform_indices = @transform_0, window_bounds = array<i64: 1, 1, 204, 8>}, {transform_indices = @transform_1, window_bounds = array<i64: 1, 170, 1>}, {pipeline_mode = #tpu.pipeline_mode<synchronous>, transform_indices = @transform_2, window_bounds = array<i64: 32, 32>}, {pipeline_mode = #tpu.pipeline_mode<synchronous>, transform_indices = @transform_3, window_bounds = array<i64: 1, 32>}, {pipeline_mode = #tpu.pipeline_mode<synchronous>, transform_indices = @transform_4, window_bounds = array<i64: 128, 32>}, {pipeline_mode = #tpu.pipeline_mode<synchronous>, transform_indices = @transform_5, window_bounds = array<i64: 1, 32>}, {pipeline_mode = #tpu.pipeline_mode<synchronous>, transform_indices = @transform_6, window_bounds = array<i64: 128, 32>}, {pipeline_mode = #tpu.pipeline_mode<synchronous>, transform_indices = @transform_7, window_bounds = array<i64: 1, 32>}, {transform_indices = @transform_8, window_bounds = array<i64: 1, 1, 136, 32>}]} {
    %c0 = arith.constant 0 : index
    %c0_0 = arith.constant 0 : index
    %c0_1 = arith.constant 0 : index
    %c0_2 = arith.constant 0 : index
    %0 = vector.load %arg2[%c0, %c0_0, %c0_1, %c0_2] : memref<1x1x204x8xf32, #tpu.memory_space<vmem>>, vector<1x1x170x8xf32>
    %1 = vector.shape_cast %0 : vector<1x1x170x8xf32> to vector<170x8xf32>
    %c0_3 = arith.constant 0 : index
    %c0_4 = arith.constant 0 : index
    %c1 = arith.constant 1 : index
    %c0_5 = arith.constant 0 : index
    %2 = vector.load %arg2[%c0_3, %c0_4, %c1, %c0_5] : memref<1x1x204x8xf32, #tpu.memory_space<vmem>>, vector<1x1x170x8xf32>
    %3 = vector.shape_cast %2 : vector<1x1x170x8xf32> to vector<170x8xf32>
    %c0_6 = arith.constant 0 : index
    %c0_7 = arith.constant 0 : index
    %c17 = arith.constant 17 : index
    %c0_8 = arith.constant 0 : index
    %4 = vector.load %arg2[%c0_6, %c0_7, %c17, %c0_8] : memref<1x1x204x8xf32, #tpu.memory_space<vmem>>, vector<1x1x170x8xf32>
    %5 = vector.shape_cast %4 : vector<1x1x170x8xf32> to vector<170x8xf32>
    %c0_9 = arith.constant 0 : index
    %c0_10 = arith.constant 0 : index
    %c18 = arith.constant 18 : index
    %c0_11 = arith.constant 0 : index
    %6 = vector.load %arg2[%c0_9, %c0_10, %c18, %c0_11] : memref<1x1x204x8xf32, #tpu.memory_space<vmem>>, vector<1x1x170x8xf32>
    %7 = vector.shape_cast %6 : vector<1x1x170x8xf32> to vector<170x8xf32>
    %8 = tpu.concatenate %1, %3, %5, %7 in 1 : vector<170x8xf32>, vector<170x8xf32>, vector<170x8xf32>, vector<170x8xf32> -> vector<170x32xf32>
    %c0_12 = arith.constant 0 : index
    %c0_13 = arith.constant 0 : index
    %9 = vector.load %arg4[%c0_12, %c0_13] : memref<32x32xf32, #tpu.memory_space<vmem>>, vector<32x32xf32>
    %cst = arith.constant dense<0.000000e+00> : vector<170x32xf32>
    %10 = tpu.matmul %8, %9, %cst {dimension_numbers = #tpu.dot_dimension_numbers<[1], [0], [0], [1], [0, 0, 1, 1], [], []>} : vector<170x32xf32>, vector<32x32xf32>, vector<170x32xf32> -> vector<170x32xf32>
    %c0_14 = arith.constant 0 : index
    %c0_15 = arith.constant 0 : index
    %11 = vector.load %arg5[%c0_14, %c0_15] : memref<1x32xf32, #tpu.memory_space<vmem>>, vector<1x32xf32>
    %12 = vector.broadcast %11 : vector<1x32xf32> to vector<170x32xf32>
    %13 = arith.addf %10, %12 : vector<170x32xf32>
    %cst_16 = arith.constant 0.000000e+00 : f32
    %14 = vector.broadcast %cst_16 : f32 to vector<170x32xf32>
    %15 = arith.maximumf %13, %14 : vector<170x32xf32>
    %c0_17 = arith.constant 0 : index
    %c0_18 = arith.constant 0 : index
    %c0_19 = arith.constant 0 : index
    %16 = vector.load %arg3[%c0_17, %c0_18, %c0_19] : memref<1x170x1xf32, #tpu.memory_space<vmem>>, vector<1x170x1xf32>
    %17 = vector.shape_cast %16 : vector<1x170x1xf32> to vector<170x1xf32>
    %18 = vector.broadcast %17 : vector<170x1xf32> to vector<170x32xf32>
    %19 = arith.mulf %15, %18 : vector<170x32xf32>
    %c0_20 = arith.constant 0 : index
    %c0_21 = arith.constant 0 : index
    %20 = vector.load %arg11[%c0_20, %c0_21] : memref<187x32xf32, #tpu.memory_space<vmem>>, vector<170x32xf32>
    tpu.vector_store %arg11[%c0_20, %c0_21], %19 {strides = array<i32>} : memref<187x32xf32, #tpu.memory_space<vmem>>, vector<170x32xf32>,
    %cst_22 = arith.constant 0.000000e+00 : f32
    %21 = vector.broadcast %cst_22 : f32 to vector<17x32xf32>
    %c170 = arith.constant 170 : index
    %c0_23 = arith.constant 0 : index
    %22 = vector.load %arg11[%c170, %c0_23] : memref<187x32xf32, #tpu.memory_space<vmem>>, vector<17x32xf32>
    tpu.vector_store %arg11[%c170, %c0_23], %21 {strides = array<i32>} : memref<187x32xf32, #tpu.memory_space<vmem>>, vector<17x32xf32>,
    %c0_24 = arith.constant 0 : index
    %c0_25 = arith.constant 0 : index
    %23 = vector.load %arg11[%c0_24, %c0_25] : memref<187x32xf32, #tpu.memory_space<vmem>>, vector<153x32xf32>
    %c1_26 = arith.constant 1 : index
    %c0_27 = arith.constant 0 : index
    %24 = vector.load %arg11[%c1_26, %c0_27] : memref<187x32xf32, #tpu.memory_space<vmem>>, vector<153x32xf32>
    %c17_28 = arith.constant 17 : index
    %c0_29 = arith.constant 0 : index
    %25 = vector.load %arg11[%c17_28, %c0_29] : memref<187x32xf32, #tpu.memory_space<vmem>>, vector<153x32xf32>
    %c18_30 = arith.constant 18 : index
    %c0_31 = arith.constant 0 : index
    %26 = vector.load %arg11[%c18_30, %c0_31] : memref<187x32xf32, #tpu.memory_space<vmem>>, vector<153x32xf32>
    %27 = tpu.concatenate %23, %24, %25, %26 in 1 : vector<153x32xf32>, vector<153x32xf32>, vector<153x32xf32>, vector<153x32xf32> -> vector<153x128xf32>
    %c0_32 = arith.constant 0 : index
    %c0_33 = arith.constant 0 : index
    %28 = vector.load %arg6[%c0_32, %c0_33] : memref<128x32xf32, #tpu.memory_space<vmem>>, vector<128x32xf32>
    %cst_34 = arith.constant dense<0.000000e+00> : vector<153x32xf32>
    %29 = tpu.matmul %27, %28, %cst_34 {dimension_numbers = #tpu.dot_dimension_numbers<[1], [0], [0], [1], [0, 0, 1, 1], [], []>} : vector<153x128xf32>, vector<128x32xf32>, vector<153x32xf32> -> vector<153x32xf32>
    %c0_35 = arith.constant 0 : index
    %c0_36 = arith.constant 0 : index
    %30 = vector.load %arg7[%c0_35, %c0_36] : memref<1x32xf32, #tpu.memory_space<vmem>>, vector<1x32xf32>
    %31 = vector.broadcast %30 : vector<1x32xf32> to vector<153x32xf32>
    %32 = arith.addf %29, %31 : vector<153x32xf32>
    %cst_37 = arith.constant 0.000000e+00 : f32
    %33 = vector.broadcast %cst_37 : f32 to vector<153x32xf32>
    %34 = arith.maximumf %32, %33 : vector<153x32xf32>
    %c0_38 = arith.constant 0 : index
    %c0_39 = arith.constant 0 : index
    %c0_40 = arith.constant 0 : index
    %35 = vector.load %arg3[%c0_38, %c0_39, %c0_40] : memref<1x170x1xf32, #tpu.memory_space<vmem>>, vector<1x153x1xf32>
    %36 = vector.shape_cast %35 : vector<1x153x1xf32> to vector<153x1xf32>
    %37 = vector.broadcast %36 : vector<153x1xf32> to vector<153x32xf32>
    %38 = arith.mulf %34, %37 : vector<153x32xf32>
    %c0_41 = arith.constant 0 : index
    %c0_42 = arith.constant 0 : index
    %39 = vector.load %arg12[%c0_41, %c0_42] : memref<170x32xf32, #tpu.memory_space<vmem>>, vector<153x32xf32>
    tpu.vector_store %arg12[%c0_41, %c0_42], %38 {strides = array<i32>} : memref<170x32xf32, #tpu.memory_space<vmem>>, vector<153x32xf32>,
    %cst_43 = arith.constant 0.000000e+00 : f32
    %40 = vector.broadcast %cst_43 : f32 to vector<17x32xf32>
    %c153 = arith.constant 153 : index
    %c0_44 = arith.constant 0 : index
    %41 = vector.load %arg12[%c153, %c0_44] : memref<170x32xf32, #tpu.memory_space<vmem>>, vector<17x32xf32>
    tpu.vector_store %arg12[%c153, %c0_44], %40 {strides = array<i32>} : memref<170x32xf32, #tpu.memory_space<vmem>>, vector<17x32xf32>,
    %c0_45 = arith.constant 0 : index
    %c0_46 = arith.constant 0 : index
    %42 = vector.load %arg12[%c0_45, %c0_46] : memref<170x32xf32, #tpu.memory_space<vmem>>, vector<136x32xf32>
    %c1_47 = arith.constant 1 : index
    %c0_48 = arith.constant 0 : index
    %43 = vector.load %arg12[%c1_47, %c0_48] : memref<170x32xf32, #tpu.memory_space<vmem>>, vector<136x32xf32>
    %c17_49 = arith.constant 17 : index
    %c0_50 = arith.constant 0 : index
    %44 = vector.load %arg12[%c17_49, %c0_50] : memref<170x32xf32, #tpu.memory_space<vmem>>, vector<136x32xf32>
    %c18_51 = arith.constant 18 : index
    %c0_52 = arith.constant 0 : index
    %45 = vector.load %arg12[%c18_51, %c0_52] : memref<170x32xf32, #tpu.memory_space<vmem>>, vector<136x32xf32>
    %46 = tpu.concatenate %42, %43, %44, %45 in 1 : vector<136x32xf32>, vector<136x32xf32>, vector<136x32xf32>, vector<136x32xf32> -> vector<136x128xf32>
    %c0_53 = arith.constant 0 : index
    %c0_54 = arith.constant 0 : index
    %47 = vector.load %arg8[%c0_53, %c0_54] : memref<128x32xf32, #tpu.memory_space<vmem>>, vector<128x32xf32>
    %cst_55 = arith.constant dense<0.000000e+00> : vector<136x32xf32>
    %48 = tpu.matmul %46, %47, %cst_55 {dimension_numbers = #tpu.dot_dimension_numbers<[1], [0], [0], [1], [0, 0, 1, 1], [], []>} : vector<136x128xf32>, vector<128x32xf32>, vector<136x32xf32> -> vector<136x32xf32>
    %c0_56 = arith.constant 0 : index
    %c0_57 = arith.constant 0 : index
    %49 = vector.load %arg9[%c0_56, %c0_57] : memref<1x32xf32, #tpu.memory_space<vmem>>, vector<1x32xf32>
    %50 = vector.broadcast %49 : vector<1x32xf32> to vector<136x32xf32>
    %51 = arith.addf %48, %50 : vector<136x32xf32>
    %cst_58 = arith.constant 0.000000e+00 : f32
    %52 = vector.broadcast %cst_58 : f32 to vector<136x32xf32>
    %53 = arith.maximumf %51, %52 : vector<136x32xf32>
    %c0_59 = arith.constant 0 : index
    %c0_60 = arith.constant 0 : index
    %c0_61 = arith.constant 0 : index
    %c0_62 = arith.constant 0 : index
    %54 = vector.load %arg10[%c0_59, %c0_60, %c0_61, %c0_62] : memref<1x1x136x32xf32, #tpu.memory_space<vmem>>, vector<1x1x136x32xf32>
    %55 = vector.shape_cast %54 : vector<1x1x136x32xf32> to vector<136x32xf32>
    %56 = vector.shape_cast %53 : vector<136x32xf32> to vector<1x1x136x32xf32>
    tpu.vector_store %arg10[%c0_59, %c0_60, %c0_61, %c0_62], %56 {strides = array<i32>} : memref<1x1x136x32xf32, #tpu.memory_space<vmem>>, vector<1x1x136x32xf32>,
    return
  }
  func.func @transform_0(%arg0: i32, %arg1: i32) -> (i32, i32, i32, i32) {
    %c0_i32 = arith.constant 0 : i32
    %c0_i32_0 = arith.constant 0 : i32
    %c0_i32_1 = arith.constant 0 : i32
    return %arg0, %arg1, %c0_i32, %c0_i32_0 : i32, i32, i32, i32
  }
  func.func @transform_1(%arg0: i32, %arg1: i32) -> (i32, i32, i32) {
    %c0_i32 = arith.constant 0 : i32
    %c0_i32_0 = arith.constant 0 : i32
    %c0_i32_1 = arith.constant 0 : i32
    return %arg1, %c0_i32, %c0_i32_0 : i32, i32, i32
  }
  func.func @transform_2(%arg0: i32, %arg1: i32) -> (i32, i32) {
    %c0_i32 = arith.constant 0 : i32
    %c0_i32_0 = arith.constant 0 : i32
    %c0_i32_1 = arith.constant 0 : i32
    return %c0_i32, %c0_i32_0 : i32, i32
  }
  func.func @transform_3(%arg0: i32, %arg1: i32) -> (i32, i32) {
    %c0_i32 = arith.constant 0 : i32
    %c0_i32_0 = arith.constant 0 : i32
    %c0_i32_1 = arith.constant 0 : i32
    return %c0_i32, %c0_i32_0 : i32, i32
  }
  func.func @transform_4(%arg0: i32, %arg1: i32) -> (i32, i32) {
    %c0_i32 = arith.constant 0 : i32
    %c0_i32_0 = arith.constant 0 : i32
    %c0_i32_1 = arith.constant 0 : i32
    return %c0_i32, %c0_i32_0 : i32, i32
  }
  func.func @transform_5(%arg0: i32, %arg1: i32) -> (i32, i32) {
    %c0_i32 = arith.constant 0 : i32
    %c0_i32_0 = arith.constant 0 : i32
    %c0_i32_1 = arith.constant 0 : i32
    return %c0_i32, %c0_i32_0 : i32, i32
  }
  func.func @transform_6(%arg0: i32, %arg1: i32) -> (i32, i32) {
    %c0_i32 = arith.constant 0 : i32
    %c0_i32_0 = arith.constant 0 : i32
    %c0_i32_1 = arith.constant 0 : i32
    return %c0_i32, %c0_i32_0 : i32, i32
  }
  func.func @transform_7(%arg0: i32, %arg1: i32) -> (i32, i32) {
    %c0_i32 = arith.constant 0 : i32
    %c0_i32_0 = arith.constant 0 : i32
    %c0_i32_1 = arith.constant 0 : i32
    return %c0_i32, %c0_i32_0 : i32, i32
  }
  func.func @transform_8(%arg0: i32, %arg1: i32) -> (i32, i32, i32, i32) {
    %c0_i32 = arith.constant 0 : i32
    %c0_i32_0 = arith.constant 0 : i32
    %c0_i32_1 = arith.constant 0 : i32
    return %arg0, %arg1, %c0_i32, %c0_i32_0 : i32, i32, i32, i32
  }
}

</mosaic_0001>

<llo_original>
// kernel: tpu_custom_call.1
$region0: #{tpu_custom_call.1}
  #allocation0 [shape = 'u32[]', space=smem, size = 0x4, offset = 0x4, fixed_abs, tag = 'smem constant byte address 0x4 - core index']
  #allocation1 [shape = 'u32[72,128]{1,0:T(1,128)}', space=vmem, size = 0x9000, scoped, tag = 'internal scratch']
  #allocation2 [shape = 'f32[187,32]{1,0:T(8,128)}', space=vmem, size = 0x18000, scoped, tag = 'scratch operand']
  #allocation3 [shape = 'f32[170,32]{1,0:T(8,128)}', space=vmem, size = 0x16000, scoped, tag = 'scratch operand']
  %s0 = inlined_call_operand.vmem [shape: f32[2,2,204,8], index: 0, kind: input, shape index: {}]
  %s1 = inlined_call_operand.vmem [shape: f32[2,170,1], index: 1, kind: input, shape index: {}]
  %s2 = inlined_call_operand.vmem [shape: f32[32,32], index: 2, kind: input, shape index: {}]
  %s3 = inlined_call_operand.vmem [shape: f32[1,32], index: 3, kind: input, shape index: {}]
  %s4 = inlined_call_operand.vmem [shape: f32[128,32], index: 4, kind: input, shape index: {}]
  %s5 = inlined_call_operand.vmem [shape: f32[1,32], index: 5, kind: input, shape index: {}]
  %s6 = inlined_call_operand.vmem [shape: f32[128,32], index: 6, kind: input, shape index: {}]
  %s7 = inlined_call_operand.vmem [shape: f32[1,32], index: 7, kind: input, shape index: {}]
  %s8 = inlined_call_operand.vmem [shape: f32[2,2,136,32], index: 8, kind: output, shape index: {}]
  %s9 = sld [smem:[#allocation0]]
  $region65: #{tpu_custom_call.1} parent=0
    _
  %s11 = ssub.s32 1, %s9
  %s12 = scalar_select 0, %s11, %s9
  loop: start=0, step=1, limit=6
  $region2: #{tpu_custom_call.1} parent=0 // loop_pre_header
    _
  $region3: #{tpu_custom_call.1} parent=0 // loop_header
    %s14 = sphi 0, %s18
    %p15 = scmp.ge.s32.totalorder %s14, 6
    %s21 = sphi 0, %s33
    %s22 = sphi 0, %s29
    %s23 = sphi 0, %s21
    %s24 = sphi 0, %s22
    %s25 = sphi 0, %s23
    %s26 = sphi 0, %s24
    %s38 = sphi 0, %s40
    %s41 = sphi 0, %s38
    %s42 = sphi 0, %s41
    %s58 = sphi 0, %s42
    %s64 = sphi 0, %s66
    %s67 = sphi 0, %s64
    %s68 = sphi 0, %s67
    %s84 = sphi 0, %s68
    %s88 = sphi 0, %s88
    %s90 = sphi 0, %s88
    %s91 = sphi 0, %s90
    %s105 = sphi 0, %s91
    %s109 = sphi 0, %s109
    %s111 = sphi 0, %s109
    %s112 = sphi 0, %s111
    %s126 = sphi 0, %s112
    %s130 = sphi 0, %s130
    %s132 = sphi 0, %s130
    %s133 = sphi 0, %s132
    %s147 = sphi 0, %s133
    %s151 = sphi 0, %s151
    %s153 = sphi 0, %s151
    %s154 = sphi 0, %s153
    %s168 = sphi 0, %s154
    %s172 = sphi 0, %s172
    %s174 = sphi 0, %s172
    %s175 = sphi 0, %s174
    %s189 = sphi 0, %s175
    %s193 = sphi 0, %s193
    %s195 = sphi 0, %s193
    %s196 = sphi 0, %s195
    %s210 = sphi 0, %s196
    %s218 = sphi 0, %s220
    %s221 = sphi 0, %s218
    %s222 = sphi 0, %s221
    %s238 = sphi 0, %s222
  $region4: #{tpu_custom_call.1} parent=0 // loop_header_branch
    %17 = sbr.rel (%p15) target = $region8
  $region5: #{tpu_custom_call.1} parent=0 // loop_body
    %s19 = ssub.s32 %s14, 1
    %s20 = ssub.s32 %s14, 2
    %s27 = sadd.s32 1, %s22
    %p28 = scmp.ge.s32.totalorder %s27, 2
    %s29 = scalar_select %p28, 0, %s27
    %s30 = sadd.s32 1, %s21
    %s31 = scalar_select %p28, %s30, %s21
    %p32 = scmp.ge.s32.totalorder %s31, 2
    %s33 = scalar_select %p32, 0, %s31
    %s34 = ssub.s32 %s21, %s33
    %s35 = ssub.s32 %s22, %s29
    %s36 = sor.u32 %s34, %s35
    %p37 = scmp.eq.s32.totalorder %s36, 0
    %s39 = sadd.s32 %s38, 1
    %s40 = scalar_select %p37, %s38, %s39
    %p43 = pneg %p37
    %p44 = scmp.eq.s32.totalorder %s14, 3
    %p45 = por %p43, %p44
    %p46 = scmp.ne.s32.totalorder %s38, %s41
    %p47 = scmp.eq.s32.totalorder %s14, 0
    %p48 = por %p46, %p47
    %p49 = scmp.ne.s32.totalorder %s38, %s41
    %p50 = scmp.eq.s32.totalorder %s19, 3
    %p51 = por %p49, %p50
    %p52 = scmp.ne.s32.totalorder %s41, %s42
    %p53 = scmp.eq.s32.totalorder %s19, 0
    %p54 = por %p52, %p53
    %p55 = scmp.ne.s32.totalorder %s41, %s42
    %p56 = scmp.eq.s32.totalorder %s20, 3
    %p57 = por %p55, %p56
    %p59 = scmp.ne.s32.totalorder %s42, %s58
    %p60 = scmp.eq.s32.totalorder %s20, 0
    %p61 = por %p59, %p60
    %s62 = ssub.s32 %s22, %s29
    %p63 = scmp.eq.s32.totalorder %s62, 0
    %s65 = sadd.s32 %s64, 1
    %s66 = scalar_select %p63, %s64, %s65
    %p69 = pneg %p63
    %p70 = scmp.eq.s32.totalorder %s14, 3
    %p71 = por %p69, %p70
    %p72 = scmp.ne.s32.totalorder %s64, %s67
    %p73 = scmp.eq.s32.totalorder %s14, 0
    %p74 = por %p72, %p73
    %p75 = scmp.ne.s32.totalorder %s64, %s67
    %p76 = scmp.eq.s32.totalorder %s19, 3
    %p77 = por %p75, %p76
    %p78 = scmp.ne.s32.totalorder %s67, %s68
    %p79 = scmp.eq.s32.totalorder %s19, 0
    %p80 = por %p78, %p79
    %p81 = scmp.ne.s32.totalorder %s67, %s68
    %p82 = scmp.eq.s32.totalorder %s20, 3
    %p83 = por %p81, %p82
    %p85 = scmp.ne.s32.totalorder %s68, %s84
    %p86 = scmp.eq.s32.totalorder %s20, 0
    %p87 = por %p85, %p86
    %s89 = sadd.s32 %s88, 1
    %p92 = scmp.eq.s32.totalorder %s14, 3
    %p93 = scmp.ne.s32.totalorder %s88, %s90
    %p94 = scmp.eq.s32.totalorder %s14, 0
    %p95 = por %p93, %p94
    %p96 = scmp.ne.s32.totalorder %s88, %s90
    %p97 = scmp.eq.s32.totalorder %s19, 3
    %p98 = por %p96, %p97
    %p99 = scmp.ne.s32.totalorder %s90, %s91
    %p100 = scmp.eq.s32.totalorder %s19, 0
    %p101 = por %p99, %p100
    %p102 = scmp.ne.s32.totalorder %s90, %s91
    %p103 = scmp.eq.s32.totalorder %s20, 3
    %p104 = por %p102, %p103
    %p106 = scmp.ne.s32.totalorder %s91, %s105
    %p107 = scmp.eq.s32.totalorder %s20, 0
    %p108 = por %p106, %p107
    %s110 = sadd.s32 %s109, 1
    %p113 = scmp.eq.s32.totalorder %s14, 3
    %p114 = scmp.ne.s32.totalorder %s109, %s111
    %p115 = scmp.eq.s32.totalorder %s14, 0
    %p116 = por %p114, %p115
    %p117 = scmp.ne.s32.totalorder %s109, %s111
    %p118 = scmp.eq.s32.totalorder %s19, 3
    %p119 = por %p117, %p118
    %p120 = scmp.ne.s32.totalorder %s111, %s112
    %p121 = scmp.eq.s32.totalorder %s19, 0
    %p122 = por %p120, %p121
    %p123 = scmp.ne.s32.totalorder %s111, %s112
    %p124 = scmp.eq.s32.totalorder %s20, 3
    %p125 = por %p123, %p124
    %p127 = scmp.ne.s32.totalorder %s112, %s126
    %p128 = scmp.eq.s32.totalorder %s20, 0
    %p129 = por %p127, %p128
    %s131 = sadd.s32 %s130, 1
    %p134 = scmp.eq.s32.totalorder %s14, 3
    %p135 = scmp.ne.s32.totalorder %s130, %s132
    %p136 = scmp.eq.s32.totalorder %s14, 0
    %p137 = por %p135, %p136
    %p138 = scmp.ne.s32.totalorder %s130, %s132
    %p139 = scmp.eq.s32.totalorder %s19, 3
    %p140 = por %p138, %p139
    %p141 = scmp.ne.s32.totalorder %s132, %s133
    %p142 = scmp.eq.s32.totalorder %s19, 0
    %p143 = por %p141, %p142
    %p144 = scmp.ne.s32.totalorder %s132, %s133
    %p145 = scmp.eq.s32.totalorder %s20, 3
    %p146 = por %p144, %p145
    %p148 = scmp.ne.s32.totalorder %s133, %s147
    %p149 = scmp.eq.s32.totalorder %s20, 0
    %p150 = por %p148, %p149
    %s152 = sadd.s32 %s151, 1
    %p155 = scmp.eq.s32.totalorder %s14, 3
    %p156 = scmp.ne.s32.totalorder %s151, %s153
    %p157 = scmp.eq.s32.totalorder %s14, 0
    %p158 = por %p156, %p157
    %p159 = scmp.ne.s32.totalorder %s151, %s153
    %p160 = scmp.eq.s32.totalorder %s19, 3
    %p161 = por %p159, %p160
    %p162 = scmp.ne.s32.totalorder %s153, %s154
    %p163 = scmp.eq.s32.totalorder %s19, 0
    %p164 = por %p162, %p163
    %p165 = scmp.ne.s32.totalorder %s153, %s154
    %p166 = scmp.eq.s32.totalorder %s20, 3
    %p167 = por %p165, %p166
    %p169 = scmp.ne.s32.totalorder %s154, %s168
    %p170 = scmp.eq.s32.totalorder %s20, 0
    %p171 = por %p169, %p170
    %s173 = sadd.s32 %s172, 1
    %p176 = scmp.eq.s32.totalorder %s14, 3
    %p177 = scmp.ne.s32.totalorder %s172, %s174
    %p178 = scmp.eq.s32.totalorder %s14, 0
    %p179 = por %p177, %p178
    %p180 = scmp.ne.s32.totalorder %s172, %s174
    %p181 = scmp.eq.s32.totalorder %s19, 3
    %p182 = por %p180, %p181
    %p183 = scmp.ne.s32.totalorder %s174, %s175
    %p184 = scmp.eq.s32.totalorder %s19, 0
    %p185 = por %p183, %p184
    %p186 = scmp.ne.s32.totalorder %s174, %s175
    %p187 = scmp.eq.s32.totalorder %s20, 3
    %p188 = por %p186, %p187
    %p190 = scmp.ne.s32.totalorder %s175, %s189
    %p191 = scmp.eq.s32.totalorder %s20, 0
    %p192 = por %p190, %p191
    %s194 = sadd.s32 %s193, 1
    %p197 = scmp.eq.s32.totalorder %s14, 3
    %p198 = scmp.ne.s32.totalorder %s193, %s195
    %p199 = scmp.eq.s32.totalorder %s14, 0
    %p200 = por %p198, %p199
    %p201 = scmp.ne.s32.totalorder %s193, %s195
    %p202 = scmp.eq.s32.totalorder %s19, 3
    %p203 = por %p201, %p202
    %p204 = scmp.ne.s32.totalorder %s195, %s196
    %p205 = scmp.eq.s32.totalorder %s19, 0
    %p206 = por %p204, %p205
    %p207 = scmp.ne.s32.totalorder %s195, %s196
    %p208 = scmp.eq.s32.totalorder %s20, 3
    %p209 = por %p207, %p208
    %p211 = scmp.ne.s32.totalorder %s196, %s210
    %p212 = scmp.eq.s32.totalorder %s20, 0
    %p213 = por %p211, %p212
    %s214 = ssub.s32 %s21, %s33
    %s215 = ssub.s32 %s22, %s29
    %s216 = sor.u32 %s214, %s215
    %p217 = scmp.eq.s32.totalorder %s216, 0
    %s219 = sadd.s32 %s218, 1
    %s220 = scalar_select %p217, %s218, %s219
    %p223 = pneg %p217
    %p224 = scmp.eq.s32.totalorder %s14, 3
    %p225 = por %p223, %p224
    %p226 = scmp.ne.s32.totalorder %s218, %s221
    %p227 = scmp.eq.s32.totalorder %s14, 0
    %p228 = por %p226, %p227
    %p229 = scmp.ne.s32.totalorder %s218, %s221
    %p230 = scmp.eq.s32.totalorder %s19, 3
    %p231 = por %p229, %p230
    %p232 = scmp.ne.s32.totalorder %s221, %s222
    %p233 = scmp.eq.s32.totalorder %s19, 0
    %p234 = por %p232, %p233
    %p235 = scmp.ne.s32.totalorder %s221, %s222
    %p236 = scmp.eq.s32.totalorder %s20, 3
    %p237 = por %p235, %p236
    %p239 = scmp.ne.s32.totalorder %s222, %s238
    %p240 = scmp.eq.s32.totalorder %s20, 0
    %p241 = por %p239, %p240
    %p242 = scmp.le.s32.totalorder 1, %s14
    %p243 = scmp.lt.s32.totalorder %s14, 5
    %p244 = pnand %p242, %p243
    %p245 = pneg %p244
    // Predicated region
    $region9: #{tpu_custom_call.1} parent=5 // pred_check
      _
    $region10: #{tpu_custom_call.1} parent=5 // pred_check_branch
      %247 = sbr.rel (%p244) target = $region12
    $region11: #{tpu_custom_call.1} parent=5 // pred_region
      %s248 = ssub.s32 %s14, 1
      // Predicated region
      $region13: #{tpu_custom_call.1} parent=11 // pred_check
        %p249 = pneg %p101
      $region14: #{tpu_custom_call.1} parent=11 // pred_check_branch
        %251 = sbr.rel (%p249) target = $region16
      $region15: #{tpu_custom_call.1} parent=11 // pred_region
        _
      $region16: #{tpu_custom_call.1} parent=11 // pred_fallthru
        _
      // Predicated region
      $region17: #{tpu_custom_call.1} parent=11 // pred_check
        %p252 = pneg %p122
      $region18: #{tpu_custom_call.1} parent=11 // pred_check_branch
        %254 = sbr.rel (%p252) target = $region20
      $region19: #{tpu_custom_call.1} parent=11 // pred_region
        _
      $region20: #{tpu_custom_call.1} parent=11 // pred_fallthru
        _
      // Predicated region
      $region21: #{tpu_custom_call.1} parent=11 // pred_check
        %p255 = pneg %p143
      $region22: #{tpu_custom_call.1} parent=11 // pred_check_branch
        %257 = sbr.rel (%p255) target = $region24
      $region23: #{tpu_custom_call.1} parent=11 // pred_region
        _
      $region24: #{tpu_custom_call.1} parent=11 // pred_fallthru
        _
      // Predicated region
      $region25: #{tpu_custom_call.1} parent=11 // pred_check
        %p258 = pneg %p164
      $region26: #{tpu_custom_call.1} parent=11 // pred_check_branch
        %260 = sbr.rel (%p258) target = $region28
      $region27: #{tpu_custom_call.1} parent=11 // pred_region
        _
      $region28: #{tpu_custom_call.1} parent=11 // pred_fallthru
        _
      // Predicated region
      $region29: #{tpu_custom_call.1} parent=11 // pred_check
        %p261 = pneg %p185
      $region30: #{tpu_custom_call.1} parent=11 // pred_check_branch
        %263 = sbr.rel (%p261) target = $region32
      $region31: #{tpu_custom_call.1} parent=11 // pred_region
        _
      $region32: #{tpu_custom_call.1} parent=11 // pred_fallthru
        _
      // Predicated region
      $region33: #{tpu_custom_call.1} parent=11 // pred_check
        %p264 = pneg %p206
      $region34: #{tpu_custom_call.1} parent=11 // pred_check_branch
        %266 = sbr.rel (%p264) target = $region36
      $region35: #{tpu_custom_call.1} parent=11 // pred_region
        _
      $region36: #{tpu_custom_call.1} parent=11 // pred_fallthru
        _
    $region12: #{tpu_custom_call.1} parent=5 // pred_fallthru
      _
    %p267 = scmp.lt.s32.totalorder %s14, 4
    // Predicated region
    $region37: #{tpu_custom_call.1} parent=5 // pred_check
      %p268 = pneg %p267
    $region38: #{tpu_custom_call.1} parent=5 // pred_check_branch
      %270 = sbr.rel (%p268) target = $region40
    $region39: #{tpu_custom_call.1} parent=5 // pred_region
      // Predicated region
      $region41: #{tpu_custom_call.1} parent=39 // pred_check
        %p271 = pneg %p48
      $region42: #{tpu_custom_call.1} parent=39 // pred_check_branch
        %273 = sbr.rel (%p271) target = $region44
      $region43: #{tpu_custom_call.1} parent=39 // pred_region
        %p274 = scmp.lt.s32.totalorder %s21, 1
        %s275 = scalar_select %p274, %s21, 1
        %p276 = scmp.lt.s32.totalorder %s22, 1
        %s277 = scalar_select %p276, %s22, 1
        %s278 = smul.addr %s277, 26
        %s279 = smul.addr %s275, 52
        %s280 = sadd.s32 %s278, %s279
        %s281 = smul.addr %s280, 8
        %s282 = scalar_lea.vmem %s0, %s281
      $region44: #{tpu_custom_call.1} parent=39 // pred_fallthru
        _
      // Predicated region
      $region45: #{tpu_custom_call.1} parent=39 // pred_check
        %p283 = pneg %p74
      $region46: #{tpu_custom_call.1} parent=39 // pred_check_branch
        %285 = sbr.rel (%p283) target = $region48
      $region47: #{tpu_custom_call.1} parent=39 // pred_region
        %p286 = scmp.lt.s32.totalorder %s22, 1
        %s287 = scalar_select %p286, %s22, 1
        %s288 = smul.addr %s287, 22
        %s289 = smul.addr %s288, 8
        %s290 = scalar_lea.vmem %s1, %s289
      $region48: #{tpu_custom_call.1} parent=39 // pred_fallthru
        _
    $region40: #{tpu_custom_call.1} parent=5 // pred_fallthru
      _
    %p291 = scmp.le.s32.totalorder 1, %s14
    %p292 = scmp.lt.s32.totalorder %s14, 5
    %p293 = pnand %p291, %p292
    %p294 = pneg %p293
    // Predicated region
    $region49: #{tpu_custom_call.1} parent=5 // pred_check
      _
    $region50: #{tpu_custom_call.1} parent=5 // pred_check_branch
      %296 = sbr.rel (%p293) target = $region52
    $region51: #{tpu_custom_call.1} parent=5 // pred_region
      %s297 = ssub.s32 %s14, 1
      %p298 = scmp.lt.s32.totalorder %s23, 1
      %s299 = scalar_select %p298, %s23, 1
      %p300 = scmp.lt.s32.totalorder %s24, 1
      %s301 = scalar_select %p300, %s24, 1
      %s302 = smul.addr %s301, 26
      %s303 = smul.addr %s299, 52
      %s304 = sadd.s32 %s302, %s303
      %s305 = smul.addr %s304, 8
      %s306 = scalar_lea.vmem %s0, %s305
      %p307 = pneg %p54
      %p308 = pneg %p51
      %p309 = scmp.lt.s32.totalorder %s24, 1
      %s310 = scalar_select %p309, %s24, 1
      %s311 = smul.addr %s310, 22
      %s312 = smul.addr %s311, 8
      %s313 = scalar_lea.vmem %s1, %s312
      %p314 = pneg %p80
      %p315 = pneg %p77
      %p316 = pneg %p101
      %p317 = pneg %p98
      %p318 = pneg %p122
      %p319 = pneg %p119
      %p320 = pneg %p143
      %p321 = pneg %p140
      %p322 = pneg %p164
      %p323 = pneg %p161
      %p324 = pneg %p185
      %p325 = pneg %p182
      %p326 = pneg %p206
      %p327 = pneg %p203
      %p328 = pneg %p234
      %p329 = pneg %p231
      %p330 = scmp.lt.s32.totalorder %s23, 1
      %s331 = scalar_select %p330, %s23, 1
      %p332 = scmp.lt.s32.totalorder %s24, 1
      %s333 = scalar_select %p332, %s24, 1
      %s334 = smul.addr %s333, 17
      %s335 = smul.addr %s331, 34
      %s336 = sadd.s32 %s334, %s335
      %s337 = smul.addr %s336, 8
      %s338 = scalar_lea.vmem %s8, %s337
      %p339 = scmp.lt.s32.totalorder %s23, 1
      %s340 = scalar_select %p339, %s23, 1
      %p341 = scmp.lt.s32.totalorder %s24, 1
      %s342 = scalar_select %p341, %s24, 1
      %s343 = smul.addr %s342, 26
      %s344 = smul.addr %s340, 52
      %s345 = sadd.s32 %s343, %s344
      %s346 = smul.addr %s345, 8
      %s347 = scalar_lea.vmem %s0, %s346
      %p348 = scmp.lt.s32.totalorder %s24, 1
      %s349 = scalar_select %p348, %s24, 1
      %s350 = smul.addr %s349, 22
      %s351 = smul.addr %s350, 8
      %s352 = scalar_lea.vmem %s1, %s351
      %p353 = scmp.lt.s32.totalorder %s23, 1
      %s354 = scalar_select %p353, %s23, 1
      %p355 = scmp.lt.s32.totalorder %s24, 1
      %s356 = scalar_select %p355, %s24, 1
      %s357 = smul.addr %s356, 17
      %s358 = smul.addr %s354, 34
      %s359 = sadd.s32 %s357, %s358
      %s360 = smul.addr %s359, 8
      %s361 = scalar_lea.vmem %s8, %s360
      %v362 = vld [vmem:[%s347] sm:$0xff]
      %v363 = vld [vmem:[%s347 + $0x8] sm:$0xff]
      %v364 = vld [vmem:[%s347 + $0x10] sm:$0xff]
      %v365 = vld [vmem:[%s347 + $0x18] sm:$0xff]
      %v366 = vld [vmem:[%s347 + $0x20] sm:$0xff]
      %v367 = vld [vmem:[%s347 + $0x28] sm:$0xff]
      %v368 = vld [vmem:[%s347 + $0x30] sm:$0xff]
      %v369 = vld [vmem:[%s347 + $0x38] sm:$0xff]
      %v370 = vld [vmem:[%s347 + $0x40] sm:$0xff]
      %v371 = vld [vmem:[%s347 + $0x48] sm:$0xff]
      %v372 = vld [vmem:[%s347 + $0x50] sm:$0xff]
      %v373 = vld [vmem:[%s347 + $0x58] sm:$0xff]
      %v374 = vld [vmem:[%s347 + $0x60] sm:$0xff]
      %v375 = vld [vmem:[%s347 + $0x68] sm:$0xff]
      %v376 = vld [vmem:[%s347 + $0x70] sm:$0xff]
      %v377 = vld [vmem:[%s347 + $0x78] sm:$0xff]
      %v378 = vld [vmem:[%s347 + $0x80] sm:$0xff]
      %v379 = vld [vmem:[%s347 + $0x88] sm:$0xff]
      %v380 = vld [vmem:[%s347 + $0x90] sm:$0xff]
      %v381 = vld [vmem:[%s347 + $0x98] sm:$0xff]
      %v382 = vld [vmem:[%s347 + $0xa0] sm:$0xff]
      %v383 = vld [vmem:[%s347 + $0xa8] sm:$0x3]
      %v384 = vld [vmem:[%s347 + $0x1] sm:$0xff]
      %v385 = vld [vmem:[%s347 + $0x9] sm:$0xff]
      %v386 = vld [vmem:[%s347 + $0x11] sm:$0xff]
      %v387 = vld [vmem:[%s347 + $0x19] sm:$0xff]
      %v388 = vld [vmem:[%s347 + $0x21] sm:$0xff]
      %v389 = vld [vmem:[%s347 + $0x29] sm:$0xff]
      %v390 = vld [vmem:[%s347 + $0x31] sm:$0xff]
      %v391 = vld [vmem:[%s347 + $0x39] sm:$0xff]
      %v392 = vld [vmem:[%s347 + $0x41] sm:$0xff]
      %v393 = vld [vmem:[%s347 + $0x49] sm:$0xff]
      %v394 = vld [vmem:[%s347 + $0x51] sm:$0xff]
      %v395 = vld [vmem:[%s347 + $0x59] sm:$0xff]
      %v396 = vld [vmem:[%s347 + $0x61] sm:$0xff]
      %v397 = vld [vmem:[%s347 + $0x69] sm:$0xff]
      %v398 = vld [vmem:[%s347 + $0x71] sm:$0xff]
      %v399 = vld [vmem:[%s347 + $0x79] sm:$0xff]
      %v400 = vld [vmem:[%s347 + $0x81] sm:$0xff]
      %v401 = vld [vmem:[%s347 + $0x89] sm:$0xff]
      %v402 = vld [vmem:[%s347 + $0x91] sm:$0xff]
      %v403 = vld [vmem:[%s347 + $0x99] sm:$0xff]
      %v404 = vld [vmem:[%s347 + $0xa1] sm:$0xff]
      %v405 = vld [vmem:[%s347 + $0xa9] sm:$0x3]
      %v406 = vld [vmem:[%s347 + $0xa9] sm:$0xff]
      %v407 = vld [vmem:[%s347 + $0xb1] sm:$0xff]
      %v408 = vld [vmem:[%s347 + $0xb9] sm:$0x3]
      %v409 = vld [vmem:[%s347 + $0x12] sm:$0xff]
      %v410 = vld [vmem:[%s347 + $0x1a] sm:$0xff]
      %v411 = vld [vmem:[%s347 + $0x22] sm:$0xff]
      %v412 = vld [vmem:[%s347 + $0x2a] sm:$0xff]
      %v413 = vld [vmem:[%s347 + $0x32] sm:$0xff]
      %v414 = vld [vmem:[%s347 + $0x3a] sm:$0xff]
      %v415 = vld [vmem:[%s347 + $0x42] sm:$0xff]
      %v416 = vld [vmem:[%s347 + $0x4a] sm:$0xff]
      %v417 = vld [vmem:[%s347 + $0x52] sm:$0xff]
      %v418 = vld [vmem:[%s347 + $0x5a] sm:$0xff]
      %v419 = vld [vmem:[%s347 + $0x62] sm:$0xff]
      %v420 = vld [vmem:[%s347 + $0x6a] sm:$0xff]
      %v421 = vld [vmem:[%s347 + $0x72] sm:$0xff]
      %v422 = vld [vmem:[%s347 + $0x7a] sm:$0xff]
      %v423 = vld [vmem:[%s347 + $0x82] sm:$0xff]
      %v424 = vld [vmem:[%s347 + $0x8a] sm:$0xff]
      %v425 = vld [vmem:[%s347 + $0x92] sm:$0xff]
      %v426 = vld [vmem:[%s347 + $0x9a] sm:$0xff]
      %v427 = vld [vmem:[%s347 + $0xa2] sm:$0xff]
      %v428 = vld [vmem:[%s347 + $0xaa] sm:$0xff]
      %v429 = vld [vmem:[%s347 + $0xb2] sm:$0xff]
      %v430 = vld [vmem:[%s347 + $0xba] sm:$0x3]
      %453 = vrot.lane.b32.xlu0 %v384, 8
      %v454 = vpop.permute.xlu0 %453
      %455 = vrot.lane.b32.xlu0 %v385, 8
      %v456 = vpop.permute.xlu0 %455
      %457 = vrot.lane.b32.xlu0 %v386, 8
      %v458 = vpop.permute.xlu0 %457
      %459 = vrot.lane.b32.xlu0 %v387, 8
      %v460 = vpop.permute.xlu0 %459
      %461 = vrot.lane.b32.xlu0 %v388, 8
      %v462 = vpop.permute.xlu0 %461
      %463 = vrot.lane.b32.xlu0 %v389, 8
      %v464 = vpop.permute.xlu0 %463
      %465 = vrot.lane.b32.xlu0 %v390, 8
      %v466 = vpop.permute.xlu0 %465
      %467 = vrot.lane.b32.xlu0 %v391, 8
      %v468 = vpop.permute.xlu0 %467
      %469 = vrot.lane.b32.xlu0 %v392, 8
      %v470 = vpop.permute.xlu0 %469
      %471 = vrot.lane.b32.xlu0 %v393, 8
      %v472 = vpop.permute.xlu0 %471
      %473 = vrot.lane.b32.xlu0 %v394, 8
      %v474 = vpop.permute.xlu0 %473
      %475 = vrot.lane.b32.xlu0 %v395, 8
      %v476 = vpop.permute.xlu0 %475
      %477 = vrot.lane.b32.xlu0 %v396, 8
      %v478 = vpop.permute.xlu0 %477
      %479 = vrot.lane.b32.xlu0 %v397, 8
      %v480 = vpop.permute.xlu0 %479
      %481 = vrot.lane.b32.xlu0 %v398, 8
      %v482 = vpop.permute.xlu0 %481
      %483 = vrot.lane.b32.xlu0 %v399, 8
      %v484 = vpop.permute.xlu0 %483
      %485 = vrot.lane.b32.xlu0 %v400, 8
      %v486 = vpop.permute.xlu0 %485
      %487 = vrot.lane.b32.xlu0 %v401, 8
      %v488 = vpop.permute.xlu0 %487
      %489 = vrot.lane.b32.xlu0 %v402, 8
      %v490 = vpop.permute.xlu0 %489
      %491 = vrot.lane.b32.xlu0 %v403, 8
      %v492 = vpop.permute.xlu0 %491
      %493 = vrot.lane.b32.xlu0 %v404, 8
      %v494 = vpop.permute.xlu0 %493
      %495 = vrot.lane.b32.xlu0 %v405, 8
      %v496 = vpop.permute.xlu0 %495
      %522 = vrot.lane.b32.xlu0 %v386, 16
      %v523 = vpop.permute.xlu0 %522
      %524 = vrot.lane.b32.xlu0 %v387, 16
      %v525 = vpop.permute.xlu0 %524
      %526 = vrot.lane.b32.xlu0 %v388, 16
      %v527 = vpop.permute.xlu0 %526
      %528 = vrot.lane.b32.xlu0 %v389, 16
      %v529 = vpop.permute.xlu0 %528
      %530 = vrot.lane.b32.xlu0 %v390, 16
      %v531 = vpop.permute.xlu0 %530
      %532 = vrot.lane.b32.xlu0 %v391, 16
      %v533 = vpop.permute.xlu0 %532
      %534 = vrot.lane.b32.xlu0 %v392, 16
      %v535 = vpop.permute.xlu0 %534
      %536 = vrot.lane.b32.xlu0 %v393, 16
      %v537 = vpop.permute.xlu0 %536
      %538 = vrot.lane.b32.xlu0 %v394, 16
      %v539 = vpop.permute.xlu0 %538
      %540 = vrot.lane.b32.xlu0 %v395, 16
      %v541 = vpop.permute.xlu0 %540
      %542 = vrot.lane.b32.xlu0 %v396, 16
      %v543 = vpop.permute.xlu0 %542
      %544 = vrot.lane.b32.xlu0 %v397, 16
      %v545 = vpop.permute.xlu0 %544
      %546 = vrot.lane.b32.xlu0 %v398, 16
      %v547 = vpop.permute.xlu0 %546
      %548 = vrot.lane.b32.xlu0 %v399, 16
      %v549 = vpop.permute.xlu0 %548
      %550 = vrot.lane.b32.xlu0 %v400, 16
      %v551 = vpop.permute.xlu0 %550
      %552 = vrot.lane.b32.xlu0 %v401, 16
      %v553 = vpop.permute.xlu0 %552
      %554 = vrot.lane.b32.xlu0 %v402, 16
      %v555 = vpop.permute.xlu0 %554
      %556 = vrot.lane.b32.xlu0 %v403, 16
      %v557 = vpop.permute.xlu0 %556
      %558 = vrot.lane.b32.xlu0 %v404, 16
      %v559 = vpop.permute.xlu0 %558
      %560 = vrot.lane.b32.xlu0 %v406, 16
      %v561 = vpop.permute.xlu0 %560
      %562 = vrot.lane.b32.xlu0 %v407, 16
      %v563 = vpop.permute.xlu0 %562
      %564 = vrot.lane.b32.xlu0 %v408, 16
      %v565 = vpop.permute.xlu0 %564
      %610 = vrot.lane.b32.xlu0 %v409, 24
      %v611 = vpop.permute.xlu0 %610
      %612 = vrot.lane.b32.xlu0 %v410, 24
      %v613 = vpop.permute.xlu0 %612
      %614 = vrot.lane.b32.xlu0 %v411, 24
      %v615 = vpop.permute.xlu0 %614
      %616 = vrot.lane.b32.xlu0 %v412, 24
      %v617 = vpop.permute.xlu0 %616
      %618 = vrot.lane.b32.xlu0 %v413, 24
      %v619 = vpop.permute.xlu0 %618
      %620 = vrot.lane.b32.xlu0 %v414, 24
      %v621 = vpop.permute.xlu0 %620
      %622 = vrot.lane.b32.xlu0 %v415, 24
      %v623 = vpop.permute.xlu0 %622
      %624 = vrot.lane.b32.xlu0 %v416, 24
      %v625 = vpop.permute.xlu0 %624
      %626 = vrot.lane.b32.xlu0 %v417, 24
      %v627 = vpop.permute.xlu0 %626
      %628 = vrot.lane.b32.xlu0 %v418, 24
      %v629 = vpop.permute.xlu0 %628
      %630 = vrot.lane.b32.xlu0 %v419, 24
      %v631 = vpop.permute.xlu0 %630
      %632 = vrot.lane.b32.xlu0 %v420, 24
      %v633 = vpop.permute.xlu0 %632
      %634 = vrot.lane.b32.xlu0 %v421, 24
      %v635 = vpop.permute.xlu0 %634
      %636 = vrot.lane.b32.xlu0 %v422, 24
      %v637 = vpop.permute.xlu0 %636
      %638 = vrot.lane.b32.xlu0 %v423, 24
      %v639 = vpop.permute.xlu0 %638
      %640 = vrot.lane.b32.xlu0 %v424, 24
      %v641 = vpop.permute.xlu0 %640
      %642 = vrot.lane.b32.xlu0 %v425, 24
      %v643 = vpop.permute.xlu0 %642
      %644 = vrot.lane.b32.xlu0 %v426, 24
      %v645 = vpop.permute.xlu0 %644
      %646 = vrot.lane.b32.xlu0 %v427, 24
      %v647 = vpop.permute.xlu0 %646
      %648 = vrot.lane.b32.xlu0 %v428, 24
      %v649 = vpop.permute.xlu0 %648
      %650 = vrot.lane.b32.xlu0 %v429, 24
      %v651 = vpop.permute.xlu0 %650
      %652 = vrot.lane.b32.xlu0 %v430, 24
      %v653 = vpop.permute.xlu0 %652
      %vm676 = vcmask 64512
      %v677 = vsel %vm676, %v362, %v454
      %v678 = vsel %vm676, %v363, %v456
      %v679 = vsel %vm676, %v364, %v458
      %v680 = vsel %vm676, %v365, %v460
      %v681 = vsel %vm676, %v366, %v462
      %v682 = vsel %vm676, %v367, %v464
      %v683 = vsel %vm676, %v368, %v466
      %v684 = vsel %vm676, %v369, %v468
      %v685 = vsel %vm676, %v370, %v470
      %v686 = vsel %vm676, %v371, %v472
      %v687 = vsel %vm676, %v372, %v474
      %v688 = vsel %vm676, %v373, %v476
      %v689 = vsel %vm676, %v374, %v478
      %v690 = vsel %vm676, %v375, %v480
      %v691 = vsel %vm676, %v376, %v482
      %v692 = vsel %vm676, %v377, %v484
      %v693 = vsel %vm676, %v378, %v486
      %v694 = vsel %vm676, %v379, %v488
      %v695 = vsel %vm676, %v380, %v490
      %v696 = vsel %vm676, %v381, %v492
      %v697 = vsel %vm676, %v382, %v494
      %v698 = vsel %vm676, %v383, %v496
      %vm699 = vcmask 130048
      %v700 = vsel %vm699, %v677, %v523
      %v701 = vsel %vm699, %v678, %v525
      %v702 = vsel %vm699, %v679, %v527
      %v703 = vsel %vm699, %v680, %v529
      %v704 = vsel %vm699, %v681, %v531
      %v705 = vsel %vm699, %v682, %v533
      %v706 = vsel %vm699, %v683, %v535
      %v707 = vsel %vm699, %v684, %v537
      %v708 = vsel %vm699, %v685, %v539
      %v709 = vsel %vm699, %v686, %v541
      %v710 = vsel %vm699, %v687, %v543
      %v711 = vsel %vm699, %v688, %v545
      %v712 = vsel %vm699, %v689, %v547
      %v713 = vsel %vm699, %v690, %v549
      %v714 = vsel %vm699, %v691, %v551
      %v715 = vsel %vm699, %v692, %v553
      %v716 = vsel %vm699, %v693, %v555
      %v717 = vsel %vm699, %v694, %v557
      %v718 = vsel %vm699, %v695, %v559
      %v719 = vsel %vm699, %v696, %v561
      %v720 = vsel %vm699, %v697, %v563
      %v721 = vsel %vm699, %v698, %v565
      %vm722 = vcmask 195584
      %v723 = vsel %vm722, %v700, %v611
      %v724 = vsel %vm722, %v701, %v613
      %v725 = vsel %vm722, %v702, %v615
      %v726 = vsel %vm722, %v703, %v617
      %v727 = vsel %vm722, %v704, %v619
      %v728 = vsel %vm722, %v705, %v621
      %v729 = vsel %vm722, %v706, %v623
      %v730 = vsel %vm722, %v707, %v625
      %v731 = vsel %vm722, %v708, %v627
      %v732 = vsel %vm722, %v709, %v629
      %v733 = vsel %vm722, %v710, %v631
      %v734 = vsel %vm722, %v711, %v633
      %v735 = vsel %vm722, %v712, %v635
      %v736 = vsel %vm722, %v713, %v637
      %v737 = vsel %vm722, %v714, %v639
      %v738 = vsel %vm722, %v715, %v641
      %v739 = vsel %vm722, %v716, %v643
      %v740 = vsel %vm722, %v717, %v645
      %v741 = vsel %vm722, %v718, %v647
      %v742 = vsel %vm722, %v719, %v649
      %v743 = vsel %vm722, %v720, %v651
      %v744 = vsel %vm722, %v721, %v653
      %v745 = vld [vmem:[%s2] sm:$0xff]
      %v746 = vld [vmem:[%s2 + $0x8] sm:$0xff]
      %v747 = vld [vmem:[%s2 + $0x10] sm:$0xff]
      %v748 = vld [vmem:[%s2 + $0x18] sm:$0xff]
      %v749 = vld [vmem:[%s3] sm:$0x1]
      %v751 = vperm.slane %v749, 0
      %vm753 = vcmask 261120
      %v755 = vsel %vm753, %v723, 0
      %v758 = vsel %vm753, %v724, 0
      %v761 = vsel %vm753, %v725, 0
      %v764 = vsel %vm753, %v726, 0
      %v767 = vsel %vm753, %v727, 0
      %v770 = vsel %vm753, %v728, 0
      %v773 = vsel %vm753, %v729, 0
      %v776 = vsel %vm753, %v730, 0
      %v779 = vsel %vm753, %v731, 0
      %v782 = vsel %vm753, %v732, 0
      %v785 = vsel %vm753, %v733, 0
      %v788 = vsel %vm753, %v734, 0
      %v791 = vsel %vm753, %v735, 0
      %v794 = vsel %vm753, %v736, 0
      %v797 = vsel %vm753, %v737, 0
      %v800 = vsel %vm753, %v738, 0
      %v803 = vsel %vm753, %v739, 0
      %v806 = vsel %vm753, %v740, 0
      %v809 = vsel %vm753, %v741, 0
      %v812 = vsel %vm753, %v742, 0
      %v815 = vsel %vm753, %v743, 0
      %v818 = vsel %vm753, %v744, 0
      %820 = vmatpush.msra.mxu0 0.0
      %821 = vmatpush.msra.mxu0 0.0
      %822 = vmatpush.msra.mxu0 0.0
      %823 = vmatpush.msra.mxu0 0.0
      %824 = vmatpush.msra.mxu0 0.0
      %825 = vmatpush.msra.mxu0 0.0
      %826 = vmatpush.msra.mxu0 0.0
      %827 = vmatpush.msra.mxu0 0.0
      %828 = vmatpush.msra.mxu0 0.0
      %829 = vmatpush.msra.mxu0 0.0
      %830 = vmatpush.msra.mxu0 0.0
      %831 = vmatpush.msra.mxu0 0.0
      %832 = vmatpush.msra.mxu0 %v748
      %833 = vmatpush.msra.mxu0 %v747
      %834 = vmatpush.msra.mxu0 %v746
      %835 = vmatpush.msra.mxu0 %v745
      %836 = vmatmul.f32.gmra.mxu0 %v755
      %v837 = vpop.f32.mrf.mxu0
      %v838 = vadd.f32 %v751, %v837
      %839 = vmatmul.f32.gmra.mxu0 %v758
      %v840 = vpop.f32.mrf.mxu0
      %v841 = vadd.f32 %v751, %v840
      %842 = vmatmul.f32.gmra.mxu0 %v761
      %v843 = vpop.f32.mrf.mxu0
      %v844 = vadd.f32 %v751, %v843
      %845 = vmatmul.f32.gmra.mxu0 %v764
      %v846 = vpop.f32.mrf.mxu0
      %v847 = vadd.f32 %v751, %v846
      %848 = vmatmul.f32.gmra.mxu0 %v767
      %v849 = vpop.f32.mrf.mxu0
      %v850 = vadd.f32 %v751, %v849
      %851 = vmatmul.f32.gmra.mxu0 %v770
      %v852 = vpop.f32.mrf.mxu0
      %v853 = vadd.f32 %v751, %v852
      %854 = vmatmul.f32.gmra.mxu0 %v773
      %v855 = vpop.f32.mrf.mxu0
      %v856 = vadd.f32 %v751, %v855
      %857 = vmatmul.f32.gmra.mxu0 %v776
      %v858 = vpop.f32.mrf.mxu0
      %v859 = vadd.f32 %v751, %v858
      %860 = vmatmul.f32.gmra.mxu0 %v779
      %v861 = vpop.f32.mrf.mxu0
      %v862 = vadd.f32 %v751, %v861
      %863 = vmatmul.f32.gmra.mxu0 %v782
      %v864 = vpop.f32.mrf.mxu0
      %v865 = vadd.f32 %v751, %v864
      %866 = vmatmul.f32.gmra.mxu0 %v785
      %v867 = vpop.f32.mrf.mxu0
      %v868 = vadd.f32 %v751, %v867
      %869 = vmatmul.f32.gmra.mxu0 %v788
      %v870 = vpop.f32.mrf.mxu0
      %v871 = vadd.f32 %v751, %v870
      %872 = vmatmul.f32.gmra.mxu0 %v791
      %v873 = vpop.f32.mrf.mxu0
      %v874 = vadd.f32 %v751, %v873
      %875 = vmatmul.f32.gmra.mxu0 %v794
      %v876 = vpop.f32.mrf.mxu0
      %v877 = vadd.f32 %v751, %v876
      %878 = vmatmul.f32.gmra.mxu0 %v797
      %v879 = vpop.f32.mrf.mxu0
      %v880 = vadd.f32 %v751, %v879
      %881 = vmatmul.f32.gmra.mxu0 %v800
      %v882 = vpop.f32.mrf.mxu0
      %v883 = vadd.f32 %v751, %v882
      %884 = vmatmul.f32.gmra.mxu0 %v803
      %v885 = vpop.f32.mrf.mxu0
      %v886 = vadd.f32 %v751, %v885
      %887 = vmatmul.f32.gmra.mxu0 %v806
      %v888 = vpop.f32.mrf.mxu0
      %v889 = vadd.f32 %v751, %v888
      %890 = vmatmul.f32.gmra.mxu0 %v809
      %v891 = vpop.f32.mrf.mxu0
      %v892 = vadd.f32 %v751, %v891
      %893 = vmatmul.f32.gmra.mxu0 %v812
      %v894 = vpop.f32.mrf.mxu0
      %v895 = vadd.f32 %v751, %v894
      %896 = vmatmul.f32.gmra.mxu0 %v815
      %v897 = vpop.f32.mrf.mxu0
      %v898 = vadd.f32 %v751, %v897
      %899 = vmatmul.f32.gmra.mxu0 %v818
      %v900 = vpop.f32.mrf.mxu0
      %v901 = vadd.f32 %v751, %v900
      %902 = vdwg.mxu0
      %v903 = vmax.f32 %v838, 0.0
      %v904 = vmax.f32 %v841, 0.0
      %v905 = vmax.f32 %v844, 0.0
      %v906 = vmax.f32 %v847, 0.0
      %v907 = vmax.f32 %v850, 0.0
      %v908 = vmax.f32 %v853, 0.0
      %v909 = vmax.f32 %v856, 0.0
      %v910 = vmax.f32 %v859, 0.0
      %v911 = vmax.f32 %v862, 0.0
      %v912 = vmax.f32 %v865, 0.0
      %v913 = vmax.f32 %v868, 0.0
      %v914 = vmax.f32 %v871, 0.0
      %v915 = vmax.f32 %v874, 0.0
      %v916 = vmax.f32 %v877, 0.0
      %v917 = vmax.f32 %v880, 0.0
      %v918 = vmax.f32 %v883, 0.0
      %v919 = vmax.f32 %v886, 0.0
      %v920 = vmax.f32 %v889, 0.0
      %v921 = vmax.f32 %v892, 0.0
      %v922 = vmax.f32 %v895, 0.0
      %v923 = vmax.f32 %v898, 0.0
      %v924 = vmax.f32 %v901, 0.0
      %v925 = vld [vmem:[%s352] sm:$0xff]
      %v926 = vld [vmem:[%s352 + $0x8] sm:$0xff]
      %v927 = vld [vmem:[%s352 + $0x10] sm:$0xff]
      %v928 = vld [vmem:[%s352 + $0x18] sm:$0xff]
      %v929 = vld [vmem:[%s352 + $0x20] sm:$0xff]
      %v930 = vld [vmem:[%s352 + $0x28] sm:$0xff]
      %v931 = vld [vmem:[%s352 + $0x30] sm:$0xff]
      %v932 = vld [vmem:[%s352 + $0x38] sm:$0xff]
      %v933 = vld [vmem:[%s352 + $0x40] sm:$0xff]
      %v934 = vld [vmem:[%s352 + $0x48] sm:$0xff]
      %v935 = vld [vmem:[%s352 + $0x50] sm:$0xff]
      %v936 = vld [vmem:[%s352 + $0x58] sm:$0xff]
      %v937 = vld [vmem:[%s352 + $0x60] sm:$0xff]
      %v938 = vld [vmem:[%s352 + $0x68] sm:$0xff]
      %v939 = vld [vmem:[%s352 + $0x70] sm:$0xff]
      %v940 = vld [vmem:[%s352 + $0x78] sm:$0xff]
      %v941 = vld [vmem:[%s352 + $0x80] sm:$0xff]
      %v942 = vld [vmem:[%s352 + $0x88] sm:$0xff]
      %v943 = vld [vmem:[%s352 + $0x90] sm:$0xff]
      %v944 = vld [vmem:[%s352 + $0x98] sm:$0xff]
      %v945 = vld [vmem:[%s352 + $0xa0] sm:$0xff]
      %v946 = vld [vmem:[%s352 + $0xa8] sm:$0x3]
      %948 = vset.pattern.permute.xlu0 0
      %949 = vperm.xlu0 %948, %v925
      %v950 = vpop.permute.xlu0 %949
      %953 = vset.pattern.permute.xlu0 0
      %954 = vperm.xlu0 %953, %v926
      %v955 = vpop.permute.xlu0 %954
      %958 = vset.pattern.permute.xlu0 0
      %959 = vperm.xlu0 %958, %v927
      %v960 = vpop.permute.xlu0 %959
      %963 = vset.pattern.permute.xlu0 0
      %964 = vperm.xlu0 %963, %v928
      %v965 = vpop.permute.xlu0 %964
      %968 = vset.pattern.permute.xlu0 0
      %969 = vperm.xlu0 %968, %v929
      %v970 = vpop.permute.xlu0 %969
      %973 = vset.pattern.permute.xlu0 0
      %974 = vperm.xlu0 %973, %v930
      %v975 = vpop.permute.xlu0 %974
      %978 = vset.pattern.permute.xlu0 0
      %979 = vperm.xlu0 %978, %v931
      %v980 = vpop.permute.xlu0 %979
      %983 = vset.pattern.permute.xlu0 0
      %984 = vperm.xlu0 %983, %v932
      %v985 = vpop.permute.xlu0 %984
      %988 = vset.pattern.permute.xlu0 0
      %989 = vperm.xlu0 %988, %v933
      %v990 = vpop.permute.xlu0 %989
      %993 = vset.pattern.permute.xlu0 0
      %994 = vperm.xlu0 %993, %v934
      %v995 = vpop.permute.xlu0 %994
      %998 = vset.pattern.permute.xlu0 0
      %999 = vperm.xlu0 %998, %v935
      %v1000 = vpop.permute.xlu0 %999
      %1003 = vset.pattern.permute.xlu0 0
      %1004 = vperm.xlu0 %1003, %v936
      %v1005 = vpop.permute.xlu0 %1004
      %1008 = vset.pattern.permute.xlu0 0
      %1009 = vperm.xlu0 %1008, %v937
      %v1010 = vpop.permute.xlu0 %1009
      %1013 = vset.pattern.permute.xlu0 0
      %1014 = vperm.xlu0 %1013, %v938
      %v1015 = vpop.permute.xlu0 %1014
      %1018 = vset.pattern.permute.xlu0 0
      %1019 = vperm.xlu0 %1018, %v939
      %v1020 = vpop.permute.xlu0 %1019
      %1023 = vset.pattern.permute.xlu0 0
      %1024 = vperm.xlu0 %1023, %v940
      %v1025 = vpop.permute.xlu0 %1024
      %1028 = vset.pattern.permute.xlu0 0
      %1029 = vperm.xlu0 %1028, %v941
      %v1030 = vpop.permute.xlu0 %1029
      %1033 = vset.pattern.permute.xlu0 0
      %1034 = vperm.xlu0 %1033, %v942
      %v1035 = vpop.permute.xlu0 %1034
      %1038 = vset.pattern.permute.xlu0 0
      %1039 = vperm.xlu0 %1038, %v943
      %v1040 = vpop.permute.xlu0 %1039
      %1043 = vset.pattern.permute.xlu0 0
      %1044 = vperm.xlu0 %1043, %v944
      %v1045 = vpop.permute.xlu0 %1044
      %1048 = vset.pattern.permute.xlu0 0
      %1049 = vperm.xlu0 %1048, %v945
      %v1050 = vpop.permute.xlu0 %1049
      %1053 = vset.pattern.permute.xlu0 0
      %1054 = vperm.xlu0 %1053, %v946
      %v1055 = vpop.permute.xlu0 %1054
      %v1057 = vmul.f32 %v903, %v950
      %v1058 = vmul.f32 %v904, %v955
      %v1059 = vmul.f32 %v905, %v960
      %v1060 = vmul.f32 %v906, %v965
      %v1061 = vmul.f32 %v907, %v970
      %v1062 = vmul.f32 %v908, %v975
      %v1063 = vmul.f32 %v909, %v980
      %v1064 = vmul.f32 %v910, %v985
      %v1065 = vmul.f32 %v911, %v990
      %v1066 = vmul.f32 %v912, %v995
      %v1067 = vmul.f32 %v913, %v1000
      %v1068 = vmul.f32 %v914, %v1005
      %v1069 = vmul.f32 %v915, %v1010
      %v1070 = vmul.f32 %v916, %v1015
      %v1071 = vmul.f32 %v917, %v1020
      %v1072 = vmul.f32 %v918, %v1025
      %v1073 = vmul.f32 %v919, %v1030
      %v1074 = vmul.f32 %v920, %v1035
      %v1075 = vmul.f32 %v921, %v1040
      %v1076 = vmul.f32 %v922, %v1045
      %v1077 = vmul.f32 %v923, %v1050
      %v1078 = vmul.f32 %v924, %v1055
      %1079 = vst.msk [vmem:[#allocation2] sm:$0xff] %vm753, %v1057
      %1080 = vst.msk [vmem:[#allocation2 + $0x8] sm:$0xff] %vm753, %v1058
      %1081 = vst.msk [vmem:[#allocation2 + $0x10] sm:$0xff] %vm753, %v1059
      %1082 = vst.msk [vmem:[#allocation2 + $0x18] sm:$0xff] %vm753, %v1060
      %1083 = vst.msk [vmem:[#allocation2 + $0x20] sm:$0xff] %vm753, %v1061
      %1084 = vst.msk [vmem:[#allocation2 + $0x28] sm:$0xff] %vm753, %v1062
      %1085 = vst.msk [vmem:[#allocation2 + $0x30] sm:$0xff] %vm753, %v1063
      %1086 = vst.msk [vmem:[#allocation2 + $0x38] sm:$0xff] %vm753, %v1064
      %1087 = vst.msk [vmem:[#allocation2 + $0x40] sm:$0xff] %vm753, %v1065
      %1088 = vst.msk [vmem:[#allocation2 + $0x48] sm:$0xff] %vm753, %v1066
      %1089 = vst.msk [vmem:[#allocation2 + $0x50] sm:$0xff] %vm753, %v1067
      %1090 = vst.msk [vmem:[#allocation2 + $0x58] sm:$0xff] %vm753, %v1068
      %1091 = vst.msk [vmem:[#allocation2 + $0x60] sm:$0xff] %vm753, %v1069
      %1092 = vst.msk [vmem:[#allocation2 + $0x68] sm:$0xff] %vm753, %v1070
      %1093 = vst.msk [vmem:[#allocation2 + $0x70] sm:$0xff] %vm753, %v1071
      %1094 = vst.msk [vmem:[#allocation2 + $0x78] sm:$0xff] %vm753, %v1072
      %1095 = vst.msk [vmem:[#allocation2 + $0x80] sm:$0xff] %vm753, %v1073
      %1096 = vst.msk [vmem:[#allocation2 + $0x88] sm:$0xff] %vm753, %v1074
      %1097 = vst.msk [vmem:[#allocation2 + $0x90] sm:$0xff] %vm753, %v1075
      %1098 = vst.msk [vmem:[#allocation2 + $0x98] sm:$0xff] %vm753, %v1076
      %1099 = vst.msk [vmem:[#allocation2 + $0xa0] sm:$0xff] %vm753, %v1077
      %vm1100 = vcmask 254976
      %1101 = vst.msk [vmem:[#allocation2 + $0xa8] sm:$0x3] %vm1100, %v1078
      %1102 = vst.msk [vmem:[#allocation2 + $0xaa] sm:$0xff] %vm753, 0.0
      %1103 = vst.msk [vmem:[#allocation2 + $0xb2] sm:$0xff] %vm753, 0.0
      %vm1104 = vcmask 253952
      %1105 = vst.msk [vmem:[#allocation2 + $0xba] sm:$0x1] %vm1104, 0.0
      %v1106 = vld [vmem:[#allocation2] sm:$0xff]
      %v1107 = vld [vmem:[#allocation2 + $0x8] sm:$0xff]
      %v1108 = vld [vmem:[#allocation2 + $0x10] sm:$0xff]
      %v1109 = vld [vmem:[#allocation2 + $0x18] sm:$0xff]
      %v1110 = vld [vmem:[#allocation2 + $0x20] sm:$0xff]
      %v1111 = vld [vmem:[#allocation2 + $0x28] sm:$0xff]
      %v1112 = vld [vmem:[#allocation2 + $0x30] sm:$0xff]
      %v1113 = vld [vmem:[#allocation2 + $0x38] sm:$0xff]
      %v1114 = vld [vmem:[#allocation2 + $0x40] sm:$0xff]
      %v1115 = vld [vmem:[#allocation2 + $0x48] sm:$0xff]
      %v1116 = vld [vmem:[#allocation2 + $0x50] sm:$0xff]
      %v1117 = vld [vmem:[#allocation2 + $0x58] sm:$0xff]
      %v1118 = vld [vmem:[#allocation2 + $0x60] sm:$0xff]
      %v1119 = vld [vmem:[#allocation2 + $0x68] sm:$0xff]
      %v1120 = vld [vmem:[#allocation2 + $0x70] sm:$0xff]
      %v1121 = vld [vmem:[#allocation2 + $0x78] sm:$0xff]
      %v1122 = vld [vmem:[#allocation2 + $0x80] sm:$0xff]
      %v1123 = vld [vmem:[#allocation2 + $0x88] sm:$0xff]
      %v1124 = vld [vmem:[#allocation2 + $0x90] sm:$0xff]
      %v1125 = vld [vmem:[#allocation2 + $0x98] sm:$0x1]
      %v1126 = vld [vmem:[#allocation2 + $0x1] sm:$0xff]
      %v1127 = vld [vmem:[#allocation2 + $0x9] sm:$0xff]
      %v1128 = vld [vmem:[#allocation2 + $0x11] sm:$0xff]
      %v1129 = vld [vmem:[#allocation2 + $0x19] sm:$0xff]
      %v1130 = vld [vmem:[#allocation2 + $0x21] sm:$0xff]
      %v1131 = vld [vmem:[#allocation2 + $0x29] sm:$0xff]
      %v1132 = vld [vmem:[#allocation2 + $0x31] sm:$0xff]
      %v1133 = vld [vmem:[#allocation2 + $0x39] sm:$0xff]
      %v1134 = vld [vmem:[#allocation2 + $0x41] sm:$0xff]
      %v1135 = vld [vmem:[#allocation2 + $0x49] sm:$0xff]
      %v1136 = vld [vmem:[#allocation2 + $0x51] sm:$0xff]
      %v1137 = vld [vmem:[#allocation2 + $0x59] sm:$0xff]
      %v1138 = vld [vmem:[#allocation2 + $0x61] sm:$0xff]
      %v1139 = vld [vmem:[#allocation2 + $0x69] sm:$0xff]
      %v1140 = vld [vmem:[#allocation2 + $0x71] sm:$0xff]
      %v1141 = vld [vmem:[#allocation2 + $0x79] sm:$0xff]
      %v1142 = vld [vmem:[#allocation2 + $0x81] sm:$0xff]
      %v1143 = vld [vmem:[#allocation2 + $0x89] sm:$0xff]
      %v1144 = vld [vmem:[#allocation2 + $0x91] sm:$0xff]
      %v1145 = vld [vmem:[#allocation2 + $0x99] sm:$0x1]
      %v1146 = vld [vmem:[#allocation2 + $0x99] sm:$0xff]
      %v1147 = vld [vmem:[#allocation2 + $0xa1] sm:$0xff]
      %v1148 = vld [vmem:[#allocation2 + $0xa9] sm:$0x1]
      %v1149 = vld [vmem:[#allocation2 + $0x12] sm:$0xff]
      %v1150 = vld [vmem:[#allocation2 + $0x1a] sm:$0xff]
      %v1151 = vld [vmem:[#allocation2 + $0x22] sm:$0xff]
      %v1152 = vld [vmem:[#allocation2 + $0x2a] sm:$0xff]
      %v1153 = vld [vmem:[#allocation2 + $0x32] sm:$0xff]
      %v1154 = vld [vmem:[#allocation2 + $0x3a] sm:$0xff]
      %v1155 = vld [vmem:[#allocation2 + $0x42] sm:$0xff]
      %v1156 = vld [vmem:[#allocation2 + $0x4a] sm:$0xff]
      %v1157 = vld [vmem:[#allocation2 + $0x52] sm:$0xff]
      %v1158 = vld [vmem:[#allocation2 + $0x5a] sm:$0xff]
      %v1159 = vld [vmem:[#allocation2 + $0x62] sm:$0xff]
      %v1160 = vld [vmem:[#allocation2 + $0x6a] sm:$0xff]
      %v1161 = vld [vmem:[#allocation2 + $0x72] sm:$0xff]
      %v1162 = vld [vmem:[#allocation2 + $0x7a] sm:$0xff]
      %v1163 = vld [vmem:[#allocation2 + $0x82] sm:$0xff]
      %v1164 = vld [vmem:[#allocation2 + $0x8a] sm:$0xff]
      %v1165 = vld [vmem:[#allocation2 + $0x92] sm:$0xff]
      %v1166 = vld [vmem:[#allocation2 + $0x9a] sm:$0xff]
      %v1167 = vld [vmem:[#allocation2 + $0xa2] sm:$0xff]
      %v1168 = vld [vmem:[#allocation2 + $0xaa] sm:$0x1]
      %1189 = vrot.lane.b32.xlu0 %v1126, 32
      %v1190 = vpop.permute.xlu0 %1189
      %1191 = vrot.lane.b32.xlu0 %v1127, 32
      %v1192 = vpop.permute.xlu0 %1191
      %1193 = vrot.lane.b32.xlu0 %v1128, 32
      %v1194 = vpop.permute.xlu0 %1193
      %1195 = vrot.lane.b32.xlu0 %v1129, 32
      %v1196 = vpop.permute.xlu0 %1195
      %1197 = vrot.lane.b32.xlu0 %v1130, 32
      %v1198 = vpop.permute.xlu0 %1197
      %1199 = vrot.lane.b32.xlu0 %v1131, 32
      %v1200 = vpop.permute.xlu0 %1199
      %1201 = vrot.lane.b32.xlu0 %v1132, 32
      %v1202 = vpop.permute.xlu0 %1201
      %1203 = vrot.lane.b32.xlu0 %v1133, 32
      %v1204 = vpop.permute.xlu0 %1203
      %1205 = vrot.lane.b32.xlu0 %v1134, 32
      %v1206 = vpop.permute.xlu0 %1205
      %1207 = vrot.lane.b32.xlu0 %v1135, 32
      %v1208 = vpop.permute.xlu0 %1207
      %1209 = vrot.lane.b32.xlu0 %v1136, 32
      %v1210 = vpop.permute.xlu0 %1209
      %1211 = vrot.lane.b32.xlu0 %v1137, 32
      %v1212 = vpop.permute.xlu0 %1211
      %1213 = vrot.lane.b32.xlu0 %v1138, 32
      %v1214 = vpop.permute.xlu0 %1213
      %1215 = vrot.lane.b32.xlu0 %v1139, 32
      %v1216 = vpop.permute.xlu0 %1215
      %1217 = vrot.lane.b32.xlu0 %v1140, 32
      %v1218 = vpop.permute.xlu0 %1217
      %1219 = vrot.lane.b32.xlu0 %v1141, 32
      %v1220 = vpop.permute.xlu0 %1219
      %1221 = vrot.lane.b32.xlu0 %v1142, 32
      %v1222 = vpop.permute.xlu0 %1221
      %1223 = vrot.lane.b32.xlu0 %v1143, 32
      %v1224 = vpop.permute.xlu0 %1223
      %1225 = vrot.lane.b32.xlu0 %v1144, 32
      %v1226 = vpop.permute.xlu0 %1225
      %1227 = vrot.lane.b32.xlu0 %v1145, 32
      %v1228 = vpop.permute.xlu0 %1227
      %1252 = vrot.lane.b32.xlu0 %v1128, 64
      %v1253 = vpop.permute.xlu0 %1252
      %1254 = vrot.lane.b32.xlu0 %v1129, 64
      %v1255 = vpop.permute.xlu0 %1254
      %1256 = vrot.lane.b32.xlu0 %v1130, 64
      %v1257 = vpop.permute.xlu0 %1256
      %1258 = vrot.lane.b32.xlu0 %v1131, 64
      %v1259 = vpop.permute.xlu0 %1258
      %1260 = vrot.lane.b32.xlu0 %v1132, 64
      %v1261 = vpop.permute.xlu0 %1260
      %1262 = vrot.lane.b32.xlu0 %v1133, 64
      %v1263 = vpop.permute.xlu0 %1262
      %1264 = vrot.lane.b32.xlu0 %v1134, 64
      %v1265 = vpop.permute.xlu0 %1264
      %1266 = vrot.lane.b32.xlu0 %v1135, 64
      %v1267 = vpop.permute.xlu0 %1266
      %1268 = vrot.lane.b32.xlu0 %v1136, 64
      %v1269 = vpop.permute.xlu0 %1268
      %1270 = vrot.lane.b32.xlu0 %v1137, 64
      %v1271 = vpop.permute.xlu0 %1270
      %1272 = vrot.lane.b32.xlu0 %v1138, 64
      %v1273 = vpop.permute.xlu0 %1272
      %1274 = vrot.lane.b32.xlu0 %v1139, 64
      %v1275 = vpop.permute.xlu0 %1274
      %1276 = vrot.lane.b32.xlu0 %v1140, 64
      %v1277 = vpop.permute.xlu0 %1276
      %1278 = vrot.lane.b32.xlu0 %v1141, 64
      %v1279 = vpop.permute.xlu0 %1278
      %1280 = vrot.lane.b32.xlu0 %v1142, 64
      %v1281 = vpop.permute.xlu0 %1280
      %1282 = vrot.lane.b32.xlu0 %v1143, 64
      %v1283 = vpop.permute.xlu0 %1282
      %1284 = vrot.lane.b32.xlu0 %v1144, 64
      %v1285 = vpop.permute.xlu0 %1284
      %1286 = vrot.lane.b32.xlu0 %v1146, 64
      %v1287 = vpop.permute.xlu0 %1286
      %1288 = vrot.lane.b32.xlu0 %v1147, 64
      %v1289 = vpop.permute.xlu0 %1288
      %1290 = vrot.lane.b32.xlu0 %v1148, 64
      %v1291 = vpop.permute.xlu0 %1290
      %1332 = vrot.lane.b32.xlu0 %v1149, 96
      %v1333 = vpop.permute.xlu0 %1332
      %1334 = vrot.lane.b32.xlu0 %v1150, 96
      %v1335 = vpop.permute.xlu0 %1334
      %1336 = vrot.lane.b32.xlu0 %v1151, 96
      %v1337 = vpop.permute.xlu0 %1336
      %1338 = vrot.lane.b32.xlu0 %v1152, 96
      %v1339 = vpop.permute.xlu0 %1338
      %1340 = vrot.lane.b32.xlu0 %v1153, 96
      %v1341 = vpop.permute.xlu0 %1340
      %1342 = vrot.lane.b32.xlu0 %v1154, 96
      %v1343 = vpop.permute.xlu0 %1342
      %1344 = vrot.lane.b32.xlu0 %v1155, 96
      %v1345 = vpop.permute.xlu0 %1344
      %1346 = vrot.lane.b32.xlu0 %v1156, 96
      %v1347 = vpop.permute.xlu0 %1346
      %1348 = vrot.lane.b32.xlu0 %v1157, 96
      %v1349 = vpop.permute.xlu0 %1348
      %1350 = vrot.lane.b32.xlu0 %v1158, 96
      %v1351 = vpop.permute.xlu0 %1350
      %1352 = vrot.lane.b32.xlu0 %v1159, 96
      %v1353 = vpop.permute.xlu0 %1352
      %1354 = vrot.lane.b32.xlu0 %v1160, 96
      %v1355 = vpop.permute.xlu0 %1354
      %1356 = vrot.lane.b32.xlu0 %v1161, 96
      %v1357 = vpop.permute.xlu0 %1356
      %1358 = vrot.lane.b32.xlu0 %v1162, 96
      %v1359 = vpop.permute.xlu0 %1358
      %1360 = vrot.lane.b32.xlu0 %v1163, 96
      %v1361 = vpop.permute.xlu0 %1360
      %1362 = vrot.lane.b32.xlu0 %v1164, 96
      %v1363 = vpop.permute.xlu0 %1362
      %1364 = vrot.lane.b32.xlu0 %v1165, 96
      %v1365 = vpop.permute.xlu0 %1364
      %1366 = vrot.lane.b32.xlu0 %v1166, 96
      %v1367 = vpop.permute.xlu0 %1366
      %1368 = vrot.lane.b32.xlu0 %v1167, 96
      %v1369 = vpop.permute.xlu0 %1368
      %1370 = vrot.lane.b32.xlu0 %v1168, 96
      %v1371 = vpop.permute.xlu0 %1370
      %v1392 = vsel %vm753, %v1106, %v1190
      %v1393 = vsel %vm753, %v1107, %v1192
      %v1394 = vsel %vm753, %v1108, %v1194
      %v1395 = vsel %vm753, %v1109, %v1196
      %v1396 = vsel %vm753, %v1110, %v1198
      %v1397 = vsel %vm753, %v1111, %v1200
      %v1398 = vsel %vm753, %v1112, %v1202
      %v1399 = vsel %vm753, %v1113, %v1204
      %v1400 = vsel %vm753, %v1114, %v1206
      %v1401 = vsel %vm753, %v1115, %v1208
      %v1402 = vsel %vm753, %v1116, %v1210
      %v1403 = vsel %vm753, %v1117, %v1212
      %v1404 = vsel %vm753, %v1118, %v1214
      %v1405 = vsel %vm753, %v1119, %v1216
      %v1406 = vsel %vm753, %v1120, %v1218
      %v1407 = vsel %vm753, %v1121, %v1220
      %v1408 = vsel %vm753, %v1122, %v1222
      %v1409 = vsel %vm753, %v1123, %v1224
      %v1410 = vsel %vm753, %v1124, %v1226
      %v1411 = vsel %vm753, %v1125, %v1228
      %vm1412 = vcmask 523264
      %v1413 = vsel %vm1412, %v1392, %v1253
      %v1414 = vsel %vm1412, %v1393, %v1255
      %v1415 = vsel %vm1412, %v1394, %v1257
      %v1416 = vsel %vm1412, %v1395, %v1259
      %v1417 = vsel %vm1412, %v1396, %v1261
      %v1418 = vsel %vm1412, %v1397, %v1263
      %v1419 = vsel %vm1412, %v1398, %v1265
      %v1420 = vsel %vm1412, %v1399, %v1267
      %v1421 = vsel %vm1412, %v1400, %v1269
      %v1422 = vsel %vm1412, %v1401, %v1271
      %v1423 = vsel %vm1412, %v1402, %v1273
      %v1424 = vsel %vm1412, %v1403, %v1275
      %v1425 = vsel %vm1412, %v1404, %v1277
      %v1426 = vsel %vm1412, %v1405, %v1279
      %v1427 = vsel %vm1412, %v1406, %v1281
      %v1428 = vsel %vm1412, %v1407, %v1283
      %v1429 = vsel %vm1412, %v1408, %v1285
      %v1430 = vsel %vm1412, %v1409, %v1287
      %v1431 = vsel %vm1412, %v1410, %v1289
      %v1432 = vsel %vm1412, %v1411, %v1291
      %vm1433 = vcmask 785408
      %v1434 = vsel %vm1433, %v1413, %v1333
      %v1435 = vsel %vm1433, %v1414, %v1335
      %v1436 = vsel %vm1433, %v1415, %v1337
      %v1437 = vsel %vm1433, %v1416, %v1339
      %v1438 = vsel %vm1433, %v1417, %v1341
      %v1439 = vsel %vm1433, %v1418, %v1343
      %v1440 = vsel %vm1433, %v1419, %v1345
      %v1441 = vsel %vm1433, %v1420, %v1347
      %v1442 = vsel %vm1433, %v1421, %v1349
      %v1443 = vsel %vm1433, %v1422, %v1351
      %v1444 = vsel %vm1433, %v1423, %v1353
      %v1445 = vsel %vm1433, %v1424, %v1355
      %v1446 = vsel %vm1433, %v1425, %v1357
      %v1447 = vsel %vm1433, %v1426, %v1359
      %v1448 = vsel %vm1433, %v1427, %v1361
      %v1449 = vsel %vm1433, %v1428, %v1363
      %v1450 = vsel %vm1433, %v1429, %v1365
      %v1451 = vsel %vm1433, %v1430, %v1367
      %v1452 = vsel %vm1433, %v1431, %v1369
      %v1453 = vsel %vm1433, %v1432, %v1371
      %v1454 = vld [vmem:[%s4] sm:$0xff]
      %v1455 = vld [vmem:[%s4 + $0x8] sm:$0xff]
      %v1456 = vld [vmem:[%s4 + $0x10] sm:$0xff]
      %v1457 = vld [vmem:[%s4 + $0x18] sm:$0xff]
      %v1458 = vld [vmem:[%s4 + $0x20] sm:$0xff]
      %v1459 = vld [vmem:[%s4 + $0x28] sm:$0xff]
      %v1460 = vld [vmem:[%s4 + $0x30] sm:$0xff]
      %v1461 = vld [vmem:[%s4 + $0x38] sm:$0xff]
      %v1462 = vld [vmem:[%s4 + $0x40] sm:$0xff]
      %v1463 = vld [vmem:[%s4 + $0x48] sm:$0xff]
      %v1464 = vld [vmem:[%s4 + $0x50] sm:$0xff]
      %v1465 = vld [vmem:[%s4 + $0x58] sm:$0xff]
      %v1466 = vld [vmem:[%s4 + $0x60] sm:$0xff]
      %v1467 = vld [vmem:[%s4 + $0x68] sm:$0xff]
      %v1468 = vld [vmem:[%s4 + $0x70] sm:$0xff]
      %v1469 = vld [vmem:[%s4 + $0x78] sm:$0xff]
      %v1470 = vld [vmem:[%s5] sm:$0x1]
      %v1472 = vperm.slane %v1470, 0
      %1474 = vmatpush.msra.mxu0 %v1469
      %1475 = vmatpush.msra.mxu0 %v1468
      %1476 = vmatpush.msra.mxu0 %v1467
      %1477 = vmatpush.msra.mxu0 %v1466
      %1478 = vmatpush.msra.mxu0 %v1465
      %1479 = vmatpush.msra.mxu0 %v1464
      %1480 = vmatpush.msra.mxu0 %v1463
      %1481 = vmatpush.msra.mxu0 %v1462
      %1482 = vmatpush.msra.mxu0 %v1461
      %1483 = vmatpush.msra.mxu0 %v1460
      %1484 = vmatpush.msra.mxu0 %v1459
      %1485 = vmatpush.msra.mxu0 %v1458
      %1486 = vmatpush.msra.mxu0 %v1457
      %1487 = vmatpush.msra.mxu0 %v1456
      %1488 = vmatpush.msra.mxu0 %v1455
      %1489 = vmatpush.msra.mxu0 %v1454
      %1490 = vmatmul.f32.gmra.mxu0 %v1434
      %v1491 = vpop.f32.mrf.mxu0
      %v1492 = vadd.f32 %v1472, %v1491
      %1493 = vmatmul.f32.gmra.mxu0 %v1435
      %v1494 = vpop.f32.mrf.mxu0
      %v1495 = vadd.f32 %v1472, %v1494
      %1496 = vmatmul.f32.gmra.mxu0 %v1436
      %v1497 = vpop.f32.mrf.mxu0
      %v1498 = vadd.f32 %v1472, %v1497
      %1499 = vmatmul.f32.gmra.mxu0 %v1437
      %v1500 = vpop.f32.mrf.mxu0
      %v1501 = vadd.f32 %v1472, %v1500
      %1502 = vmatmul.f32.gmra.mxu0 %v1438
      %v1503 = vpop.f32.mrf.mxu0
      %v1504 = vadd.f32 %v1472, %v1503
      %1505 = vmatmul.f32.gmra.mxu0 %v1439
      %v1506 = vpop.f32.mrf.mxu0
      %v1507 = vadd.f32 %v1472, %v1506
      %1508 = vmatmul.f32.gmra.mxu0 %v1440
      %v1509 = vpop.f32.mrf.mxu0
      %v1510 = vadd.f32 %v1472, %v1509
      %1511 = vmatmul.f32.gmra.mxu0 %v1441
      %v1512 = vpop.f32.mrf.mxu0
      %v1513 = vadd.f32 %v1472, %v1512
      %1514 = vmatmul.f32.gmra.mxu0 %v1442
      %v1515 = vpop.f32.mrf.mxu0
      %v1516 = vadd.f32 %v1472, %v1515
      %1517 = vmatmul.f32.gmra.mxu0 %v1443
      %v1518 = vpop.f32.mrf.mxu0
      %v1519 = vadd.f32 %v1472, %v1518
      %1520 = vmatmul.f32.gmra.mxu0 %v1444
      %v1521 = vpop.f32.mrf.mxu0
      %v1522 = vadd.f32 %v1472, %v1521
      %1523 = vmatmul.f32.gmra.mxu0 %v1445
      %v1524 = vpop.f32.mrf.mxu0
      %v1525 = vadd.f32 %v1472, %v1524
      %1526 = vmatmul.f32.gmra.mxu0 %v1446
      %v1527 = vpop.f32.mrf.mxu0
      %v1528 = vadd.f32 %v1472, %v1527
      %1529 = vmatmul.f32.gmra.mxu0 %v1447
      %v1530 = vpop.f32.mrf.mxu0
      %v1531 = vadd.f32 %v1472, %v1530
      %1532 = vmatmul.f32.gmra.mxu0 %v1448
      %v1533 = vpop.f32.mrf.mxu0
      %v1534 = vadd.f32 %v1472, %v1533
      %1535 = vmatmul.f32.gmra.mxu0 %v1449
      %v1536 = vpop.f32.mrf.mxu0
      %v1537 = vadd.f32 %v1472, %v1536
      %1538 = vmatmul.f32.gmra.mxu0 %v1450
      %v1539 = vpop.f32.mrf.mxu0
      %v1540 = vadd.f32 %v1472, %v1539
      %1541 = vmatmul.f32.gmra.mxu0 %v1451
      %v1542 = vpop.f32.mrf.mxu0
      %v1543 = vadd.f32 %v1472, %v1542
      %1544 = vmatmul.f32.gmra.mxu0 %v1452
      %v1545 = vpop.f32.mrf.mxu0
      %v1546 = vadd.f32 %v1472, %v1545
      %1547 = vmatmul.f32.gmra.mxu0 %v1453
      %v1548 = vpop.f32.mrf.mxu0
      %v1549 = vadd.f32 %v1472, %v1548
      %1550 = vdwg.mxu0
      %v1551 = vmax.f32 %v1492, 0.0
      %v1552 = vmax.f32 %v1495, 0.0
      %v1553 = vmax.f32 %v1498, 0.0
      %v1554 = vmax.f32 %v1501, 0.0
      %v1555 = vmax.f32 %v1504, 0.0
      %v1556 = vmax.f32 %v1507, 0.0
      %v1557 = vmax.f32 %v1510, 0.0
      %v1558 = vmax.f32 %v1513, 0.0
      %v1559 = vmax.f32 %v1516, 0.0
      %v1560 = vmax.f32 %v1519, 0.0
      %v1561 = vmax.f32 %v1522, 0.0
      %v1562 = vmax.f32 %v1525, 0.0
      %v1563 = vmax.f32 %v1528, 0.0
      %v1564 = vmax.f32 %v1531, 0.0
      %v1565 = vmax.f32 %v1534, 0.0
      %v1566 = vmax.f32 %v1537, 0.0
      %v1567 = vmax.f32 %v1540, 0.0
      %v1568 = vmax.f32 %v1543, 0.0
      %v1569 = vmax.f32 %v1546, 0.0
      %v1570 = vmax.f32 %v1549, 0.0
      %v1571 = vld [vmem:[%s352] sm:$0xff]
      %v1572 = vld [vmem:[%s352 + $0x8] sm:$0xff]
      %v1573 = vld [vmem:[%s352 + $0x10] sm:$0xff]
      %v1574 = vld [vmem:[%s352 + $0x18] sm:$0xff]
      %v1575 = vld [vmem:[%s352 + $0x20] sm:$0xff]
      %v1576 = vld [vmem:[%s352 + $0x28] sm:$0xff]
      %v1577 = vld [vmem:[%s352 + $0x30] sm:$0xff]
      %v1578 = vld [vmem:[%s352 + $0x38] sm:$0xff]
      %v1579 = vld [vmem:[%s352 + $0x40] sm:$0xff]
      %v1580 = vld [vmem:[%s352 + $0x48] sm:$0xff]
      %v1581 = vld [vmem:[%s352 + $0x50] sm:$0xff]
      %v1582 = vld [vmem:[%s352 + $0x58] sm:$0xff]
      %v1583 = vld [vmem:[%s352 + $0x60] sm:$0xff]
      %v1584 = vld [vmem:[%s352 + $0x68] sm:$0xff]
      %v1585 = vld [vmem:[%s352 + $0x70] sm:$0xff]
      %v1586 = vld [vmem:[%s352 + $0x78] sm:$0xff]
      %v1587 = vld [vmem:[%s352 + $0x80] sm:$0xff]
      %v1588 = vld [vmem:[%s352 + $0x88] sm:$0xff]
      %v1589 = vld [vmem:[%s352 + $0x90] sm:$0xff]
      %v1590 = vld [vmem:[%s352 + $0x98] sm:$0x1]
      %1592 = vset.pattern.permute.xlu0 0
      %1593 = vperm.xlu0 %1592, %v1571
      %v1594 = vpop.permute.xlu0 %1593
      %1597 = vset.pattern.permute.xlu0 0
      %1598 = vperm.xlu0 %1597, %v1572
      %v1599 = vpop.permute.xlu0 %1598
      %1602 = vset.pattern.permute.xlu0 0
      %1603 = vperm.xlu0 %1602, %v1573
      %v1604 = vpop.permute.xlu0 %1603
      %1607 = vset.pattern.permute.xlu0 0
      %1608 = vperm.xlu0 %1607, %v1574
      %v1609 = vpop.permute.xlu0 %1608
      %1612 = vset.pattern.permute.xlu0 0
      %1613 = vperm.xlu0 %1612, %v1575
      %v1614 = vpop.permute.xlu0 %1613
      %1617 = vset.pattern.permute.xlu0 0
      %1618 = vperm.xlu0 %1617, %v1576
      %v1619 = vpop.permute.xlu0 %1618
      %1622 = vset.pattern.permute.xlu0 0
      %1623 = vperm.xlu0 %1622, %v1577
      %v1624 = vpop.permute.xlu0 %1623
      %1627 = vset.pattern.permute.xlu0 0
      %1628 = vperm.xlu0 %1627, %v1578
      %v1629 = vpop.permute.xlu0 %1628
      %1632 = vset.pattern.permute.xlu0 0
      %1633 = vperm.xlu0 %1632, %v1579
      %v1634 = vpop.permute.xlu0 %1633
      %1637 = vset.pattern.permute.xlu0 0
      %1638 = vperm.xlu0 %1637, %v1580
      %v1639 = vpop.permute.xlu0 %1638
      %1642 = vset.pattern.permute.xlu0 0
      %1643 = vperm.xlu0 %1642, %v1581
      %v1644 = vpop.permute.xlu0 %1643
      %1647 = vset.pattern.permute.xlu0 0
      %1648 = vperm.xlu0 %1647, %v1582
      %v1649 = vpop.permute.xlu0 %1648
      %1652 = vset.pattern.permute.xlu0 0
      %1653 = vperm.xlu0 %1652, %v1583
      %v1654 = vpop.permute.xlu0 %1653
      %1657 = vset.pattern.permute.xlu0 0
      %1658 = vperm.xlu0 %1657, %v1584
      %v1659 = vpop.permute.xlu0 %1658
      %1662 = vset.pattern.permute.xlu0 0
      %1663 = vperm.xlu0 %1662, %v1585
      %v1664 = vpop.permute.xlu0 %1663
      %1667 = vset.pattern.permute.xlu0 0
      %1668 = vperm.xlu0 %1667, %v1586
      %v1669 = vpop.permute.xlu0 %1668
      %1672 = vset.pattern.permute.xlu0 0
      %1673 = vperm.xlu0 %1672, %v1587
      %v1674 = vpop.permute.xlu0 %1673
      %1677 = vset.pattern.permute.xlu0 0
      %1678 = vperm.xlu0 %1677, %v1588
      %v1679 = vpop.permute.xlu0 %1678
      %1682 = vset.pattern.permute.xlu0 0
      %1683 = vperm.xlu0 %1682, %v1589
      %v1684 = vpop.permute.xlu0 %1683
      %1687 = vset.pattern.permute.xlu0 0
      %1688 = vperm.xlu0 %1687, %v1590
      %v1689 = vpop.permute.xlu0 %1688
      %v1691 = vmul.f32 %v1551, %v1594
      %v1692 = vmul.f32 %v1552, %v1599
      %v1693 = vmul.f32 %v1553, %v1604
      %v1694 = vmul.f32 %v1554, %v1609
      %v1695 = vmul.f32 %v1555, %v1614
      %v1696 = vmul.f32 %v1556, %v1619
      %v1697 = vmul.f32 %v1557, %v1624
      %v1698 = vmul.f32 %v1558, %v1629
      %v1699 = vmul.f32 %v1559, %v1634
      %v1700 = vmul.f32 %v1560, %v1639
      %v1701 = vmul.f32 %v1561, %v1644
      %v1702 = vmul.f32 %v1562, %v1649
      %v1703 = vmul.f32 %v1563, %v1654
      %v1704 = vmul.f32 %v1564, %v1659
      %v1705 = vmul.f32 %v1565, %v1664
      %v1706 = vmul.f32 %v1566, %v1669
      %v1707 = vmul.f32 %v1567, %v1674
      %v1708 = vmul.f32 %v1568, %v1679
      %v1709 = vmul.f32 %v1569, %v1684
      %v1710 = vmul.f32 %v1570, %v1689
      %1711 = vst.msk [vmem:[#allocation3] sm:$0xff] %vm753, %v1691
      %1712 = vst.msk [vmem:[#allocation3 + $0x8] sm:$0xff] %vm753, %v1692
      %1713 = vst.msk [vmem:[#allocation3 + $0x10] sm:$0xff] %vm753, %v1693
      %1714 = vst.msk [vmem:[#allocation3 + $0x18] sm:$0xff] %vm753, %v1694
      %1715 = vst.msk [vmem:[#allocation3 + $0x20] sm:$0xff] %vm753, %v1695
      %1716 = vst.msk [vmem:[#allocation3 + $0x28] sm:$0xff] %vm753, %v1696
      %1717 = vst.msk [vmem:[#allocation3 + $0x30] sm:$0xff] %vm753, %v1697
      %1718 = vst.msk [vmem:[#allocation3 + $0x38] sm:$0xff] %vm753, %v1698
      %1719 = vst.msk [vmem:[#allocation3 + $0x40] sm:$0xff] %vm753, %v1699
      %1720 = vst.msk [vmem:[#allocation3 + $0x48] sm:$0xff] %vm753, %v1700
      %1721 = vst.msk [vmem:[#allocation3 + $0x50] sm:$0xff] %vm753, %v1701
      %1722 = vst.msk [vmem:[#allocation3 + $0x58] sm:$0xff] %vm753, %v1702
      %1723 = vst.msk [vmem:[#allocation3 + $0x60] sm:$0xff] %vm753, %v1703
      %1724 = vst.msk [vmem:[#allocation3 + $0x68] sm:$0xff] %vm753, %v1704
      %1725 = vst.msk [vmem:[#allocation3 + $0x70] sm:$0xff] %vm753, %v1705
      %1726 = vst.msk [vmem:[#allocation3 + $0x78] sm:$0xff] %vm753, %v1706
      %1727 = vst.msk [vmem:[#allocation3 + $0x80] sm:$0xff] %vm753, %v1707
      %1728 = vst.msk [vmem:[#allocation3 + $0x88] sm:$0xff] %vm753, %v1708
      %1729 = vst.msk [vmem:[#allocation3 + $0x90] sm:$0xff] %vm753, %v1709
      %1730 = vst.msk [vmem:[#allocation3 + $0x98] sm:$0x1] %vm1104, %v1710
      %1731 = vst.msk [vmem:[#allocation3 + $0x99] sm:$0xff] %vm753, 0.0
      %1732 = vst.msk [vmem:[#allocation3 + $0xa1] sm:$0xff] %vm753, 0.0
      %1733 = vst.msk [vmem:[#allocation3 + $0xa9] sm:$0x1] %vm1104, 0.0
      %v1734 = vld [vmem:[#allocation3] sm:$0xff]
      %v1735 = vld [vmem:[#allocation3 + $0x8] sm:$0xff]
      %v1736 = vld [vmem:[#allocation3 + $0x10] sm:$0xff]
      %v1737 = vld [vmem:[#allocation3 + $0x18] sm:$0xff]
      %v1738 = vld [vmem:[#allocation3 + $0x20] sm:$0xff]
      %v1739 = vld [vmem:[#allocation3 + $0x28] sm:$0xff]
      %v1740 = vld [vmem:[#allocation3 + $0x30] sm:$0xff]
      %v1741 = vld [vmem:[#allocation3 + $0x38] sm:$0xff]
      %v1742 = vld [vmem:[#allocation3 + $0x40] sm:$0xff]
      %v1743 = vld [vmem:[#allocation3 + $0x48] sm:$0xff]
      %v1744 = vld [vmem:[#allocation3 + $0x50] sm:$0xff]
      %v1745 = vld [vmem:[#allocation3 + $0x58] sm:$0xff]
      %v1746 = vld [vmem:[#allocation3 + $0x60] sm:$0xff]
      %v1747 = vld [vmem:[#allocation3 + $0x68] sm:$0xff]
      %v1748 = vld [vmem:[#allocation3 + $0x70] sm:$0xff]
      %v1749 = vld [vmem:[#allocation3 + $0x78] sm:$0xff]
      %v1750 = vld [vmem:[#allocation3 + $0x80] sm:$0xff]
      %v1751 = vld [vmem:[#allocation3 + $0x1] sm:$0xff]
      %v1752 = vld [vmem:[#allocation3 + $0x9] sm:$0xff]
      %v1753 = vld [vmem:[#allocation3 + $0x11] sm:$0xff]
      %v1754 = vld [vmem:[#allocation3 + $0x19] sm:$0xff]
      %v1755 = vld [vmem:[#allocation3 + $0x21] sm:$0xff]
      %v1756 = vld [vmem:[#allocation3 + $0x29] sm:$0xff]
      %v1757 = vld [vmem:[#allocation3 + $0x31] sm:$0xff]
      %v1758 = vld [vmem:[#allocation3 + $0x39] sm:$0xff]
      %v1759 = vld [vmem:[#allocation3 + $0x41] sm:$0xff]
      %v1760 = vld [vmem:[#allocation3 + $0x49] sm:$0xff]
      %v1761 = vld [vmem:[#allocation3 + $0x51] sm:$0xff]
      %v1762 = vld [vmem:[#allocation3 + $0x59] sm:$0xff]
      %v1763 = vld [vmem:[#allocation3 + $0x61] sm:$0xff]
      %v1764 = vld [vmem:[#allocation3 + $0x69] sm:$0xff]
      %v1765 = vld [vmem:[#allocation3 + $0x71] sm:$0xff]
      %v1766 = vld [vmem:[#allocation3 + $0x79] sm:$0xff]
      %v1767 = vld [vmem:[#allocation3 + $0x81] sm:$0xff]
      %v1768 = vld [vmem:[#allocation3 + $0x89] sm:$0xff]
      %v1769 = vld [vmem:[#allocation3 + $0x91] sm:$0xff]
      %v1770 = vld [vmem:[#allocation3 + $0x12] sm:$0xff]
      %v1771 = vld [vmem:[#allocation3 + $0x1a] sm:$0xff]
      %v1772 = vld [vmem:[#allocation3 + $0x22] sm:$0xff]
      %v1773 = vld [vmem:[#allocation3 + $0x2a] sm:$0xff]
      %v1774 = vld [vmem:[#allocation3 + $0x32] sm:$0xff]
      %v1775 = vld [vmem:[#allocation3 + $0x3a] sm:$0xff]
      %v1776 = vld [vmem:[#allocation3 + $0x42] sm:$0xff]
      %v1777 = vld [vmem:[#allocation3 + $0x4a] sm:$0xff]
      %v1778 = vld [vmem:[#allocation3 + $0x52] sm:$0xff]
      %v1779 = vld [vmem:[#allocation3 + $0x5a] sm:$0xff]
      %v1780 = vld [vmem:[#allocation3 + $0x62] sm:$0xff]
      %v1781 = vld [vmem:[#allocation3 + $0x6a] sm:$0xff]
      %v1782 = vld [vmem:[#allocation3 + $0x72] sm:$0xff]
      %v1783 = vld [vmem:[#allocation3 + $0x7a] sm:$0xff]
      %v1784 = vld [vmem:[#allocation3 + $0x82] sm:$0xff]
      %v1785 = vld [vmem:[#allocation3 + $0x8a] sm:$0xff]
      %v1786 = vld [vmem:[#allocation3 + $0x92] sm:$0xff]
      %1804 = vrot.lane.b32.xlu0 %v1751, 32
      %v1805 = vpop.permute.xlu0 %1804
      %1806 = vrot.lane.b32.xlu0 %v1752, 32
      %v1807 = vpop.permute.xlu0 %1806
      %1808 = vrot.lane.b32.xlu0 %v1753, 32
      %v1809 = vpop.permute.xlu0 %1808
      %1810 = vrot.lane.b32.xlu0 %v1754, 32
      %v1811 = vpop.permute.xlu0 %1810
      %1812 = vrot.lane.b32.xlu0 %v1755, 32
      %v1813 = vpop.permute.xlu0 %1812
      %1814 = vrot.lane.b32.xlu0 %v1756, 32
      %v1815 = vpop.permute.xlu0 %1814
      %1816 = vrot.lane.b32.xlu0 %v1757, 32
      %v1817 = vpop.permute.xlu0 %1816
      %1818 = vrot.lane.b32.xlu0 %v1758, 32
      %v1819 = vpop.permute.xlu0 %1818
      %1820 = vrot.lane.b32.xlu0 %v1759, 32
      %v1821 = vpop.permute.xlu0 %1820
      %1822 = vrot.lane.b32.xlu0 %v1760, 32
      %v1823 = vpop.permute.xlu0 %1822
      %1824 = vrot.lane.b32.xlu0 %v1761, 32
      %v1825 = vpop.permute.xlu0 %1824
      %1826 = vrot.lane.b32.xlu0 %v1762, 32
      %v1827 = vpop.permute.xlu0 %1826
      %1828 = vrot.lane.b32.xlu0 %v1763, 32
      %v1829 = vpop.permute.xlu0 %1828
      %1830 = vrot.lane.b32.xlu0 %v1764, 32
      %v1831 = vpop.permute.xlu0 %1830
      %1832 = vrot.lane.b32.xlu0 %v1765, 32
      %v1833 = vpop.permute.xlu0 %1832
      %1834 = vrot.lane.b32.xlu0 %v1766, 32
      %v1835 = vpop.permute.xlu0 %1834
      %1836 = vrot.lane.b32.xlu0 %v1767, 32
      %v1837 = vpop.permute.xlu0 %1836
      %1857 = vrot.lane.b32.xlu0 %v1753, 64
      %v1858 = vpop.permute.xlu0 %1857
      %1859 = vrot.lane.b32.xlu0 %v1754, 64
      %v1860 = vpop.permute.xlu0 %1859
      %1861 = vrot.lane.b32.xlu0 %v1755, 64
      %v1862 = vpop.permute.xlu0 %1861
      %1863 = vrot.lane.b32.xlu0 %v1756, 64
      %v1864 = vpop.permute.xlu0 %1863
      %1865 = vrot.lane.b32.xlu0 %v1757, 64
      %v1866 = vpop.permute.xlu0 %1865
      %1867 = vrot.lane.b32.xlu0 %v1758, 64
      %v1868 = vpop.permute.xlu0 %1867
      %1869 = vrot.lane.b32.xlu0 %v1759, 64
      %v1870 = vpop.permute.xlu0 %1869
      %1871 = vrot.lane.b32.xlu0 %v1760, 64
      %v1872 = vpop.permute.xlu0 %1871
      %1873 = vrot.lane.b32.xlu0 %v1761, 64
      %v1874 = vpop.permute.xlu0 %1873
      %1875 = vrot.lane.b32.xlu0 %v1762, 64
      %v1876 = vpop.permute.xlu0 %1875
      %1877 = vrot.lane.b32.xlu0 %v1763, 64
      %v1878 = vpop.permute.xlu0 %1877
      %1879 = vrot.lane.b32.xlu0 %v1764, 64
      %v1880 = vpop.permute.xlu0 %1879
      %1881 = vrot.lane.b32.xlu0 %v1765, 64
      %v1882 = vpop.permute.xlu0 %1881
      %1883 = vrot.lane.b32.xlu0 %v1766, 64
      %v1884 = vpop.permute.xlu0 %1883
      %1885 = vrot.lane.b32.xlu0 %v1767, 64
      %v1886 = vpop.permute.xlu0 %1885
      %1887 = vrot.lane.b32.xlu0 %v1768, 64
      %v1888 = vpop.permute.xlu0 %1887
      %1889 = vrot.lane.b32.xlu0 %v1769, 64
      %v1890 = vpop.permute.xlu0 %1889
      %1925 = vrot.lane.b32.xlu0 %v1770, 96
      %v1926 = vpop.permute.xlu0 %1925
      %1927 = vrot.lane.b32.xlu0 %v1771, 96
      %v1928 = vpop.permute.xlu0 %1927
      %1929 = vrot.lane.b32.xlu0 %v1772, 96
      %v1930 = vpop.permute.xlu0 %1929
      %1931 = vrot.lane.b32.xlu0 %v1773, 96
      %v1932 = vpop.permute.xlu0 %1931
      %1933 = vrot.lane.b32.xlu0 %v1774, 96
      %v1934 = vpop.permute.xlu0 %1933
      %1935 = vrot.lane.b32.xlu0 %v1775, 96
      %v1936 = vpop.permute.xlu0 %1935
      %1937 = vrot.lane.b32.xlu0 %v1776, 96
      %v1938 = vpop.permute.xlu0 %1937
      %1939 = vrot.lane.b32.xlu0 %v1777, 96
      %v1940 = vpop.permute.xlu0 %1939
      %1941 = vrot.lane.b32.xlu0 %v1778, 96
      %v1942 = vpop.permute.xlu0 %1941
      %1943 = vrot.lane.b32.xlu0 %v1779, 96
      %v1944 = vpop.permute.xlu0 %1943
      %1945 = vrot.lane.b32.xlu0 %v1780, 96
      %v1946 = vpop.permute.xlu0 %1945
      %1947 = vrot.lane.b32.xlu0 %v1781, 96
      %v1948 = vpop.permute.xlu0 %1947
      %1949 = vrot.lane.b32.xlu0 %v1782, 96
      %v1950 = vpop.permute.xlu0 %1949
      %1951 = vrot.lane.b32.xlu0 %v1783, 96
      %v1952 = vpop.permute.xlu0 %1951
      %1953 = vrot.lane.b32.xlu0 %v1784, 96
      %v1954 = vpop.permute.xlu0 %1953
      %1955 = vrot.lane.b32.xlu0 %v1785, 96
      %v1956 = vpop.permute.xlu0 %1955
      %1957 = vrot.lane.b32.xlu0 %v1786, 96
      %v1958 = vpop.permute.xlu0 %1957
      %v1976 = vsel %vm753, %v1734, %v1805
      %v1977 = vsel %vm753, %v1735, %v1807
      %v1978 = vsel %vm753, %v1736, %v1809
      %v1979 = vsel %vm753, %v1737, %v1811
      %v1980 = vsel %vm753, %v1738, %v1813
      %v1981 = vsel %vm753, %v1739, %v1815
      %v1982 = vsel %vm753, %v1740, %v1817
      %v1983 = vsel %vm753, %v1741, %v1819
      %v1984 = vsel %vm753, %v1742, %v1821
      %v1985 = vsel %vm753, %v1743, %v1823
      %v1986 = vsel %vm753, %v1744, %v1825
      %v1987 = vsel %vm753, %v1745, %v1827
      %v1988 = vsel %vm753, %v1746, %v1829
      %v1989 = vsel %vm753, %v1747, %v1831
      %v1990 = vsel %vm753, %v1748, %v1833
      %v1991 = vsel %vm753, %v1749, %v1835
      %v1992 = vsel %vm753, %v1750, %v1837
      %v1993 = vsel %vm1412, %v1976, %v1858
      %v1994 = vsel %vm1412, %v1977, %v1860
      %v1995 = vsel %vm1412, %v1978, %v1862
      %v1996 = vsel %vm1412, %v1979, %v1864
      %v1997 = vsel %vm1412, %v1980, %v1866
      %v1998 = vsel %vm1412, %v1981, %v1868
      %v1999 = vsel %vm1412, %v1982, %v1870
      %v2000 = vsel %vm1412, %v1983, %v1872
      %v2001 = vsel %vm1412, %v1984, %v1874
      %v2002 = vsel %vm1412, %v1985, %v1876
      %v2003 = vsel %vm1412, %v1986, %v1878
      %v2004 = vsel %vm1412, %v1987, %v1880
      %v2005 = vsel %vm1412, %v1988, %v1882
      %v2006 = vsel %vm1412, %v1989, %v1884
      %v2007 = vsel %vm1412, %v1990, %v1886
      %v2008 = vsel %vm1412, %v1991, %v1888
      %v2009 = vsel %vm1412, %v1992, %v1890
      %v2010 = vsel %vm1433, %v1993, %v1926
      %v2011 = vsel %vm1433, %v1994, %v1928
      %v2012 = vsel %vm1433, %v1995, %v1930
      %v2013 = vsel %vm1433, %v1996, %v1932
      %v2014 = vsel %vm1433, %v1997, %v1934
      %v2015 = vsel %vm1433, %v1998, %v1936
      %v2016 = vsel %vm1433, %v1999, %v1938
      %v2017 = vsel %vm1433, %v2000, %v1940
      %v2018 = vsel %vm1433, %v2001, %v1942
      %v2019 = vsel %vm1433, %v2002, %v1944
      %v2020 = vsel %vm1433, %v2003, %v1946
      %v2021 = vsel %vm1433, %v2004, %v1948
      %v2022 = vsel %vm1433, %v2005, %v1950
      %v2023 = vsel %vm1433, %v2006, %v1952
      %v2024 = vsel %vm1433, %v2007, %v1954
      %v2025 = vsel %vm1433, %v2008, %v1956
      %v2026 = vsel %vm1433, %v2009, %v1958
      %v2027 = vld [vmem:[%s6] sm:$0xff]
      %v2028 = vld [vmem:[%s6 + $0x8] sm:$0xff]
      %v2029 = vld [vmem:[%s6 + $0x10] sm:$0xff]
      %v2030 = vld [vmem:[%s6 + $0x18] sm:$0xff]
      %v2031 = vld [vmem:[%s6 + $0x20] sm:$0xff]
      %v2032 = vld [vmem:[%s6 + $0x28] sm:$0xff]
      %v2033 = vld [vmem:[%s6 + $0x30] sm:$0xff]
      %v2034 = vld [vmem:[%s6 + $0x38] sm:$0xff]
      %v2035 = vld [vmem:[%s6 + $0x40] sm:$0xff]
      %v2036 = vld [vmem:[%s6 + $0x48] sm:$0xff]
      %v2037 = vld [vmem:[%s6 + $0x50] sm:$0xff]
      %v2038 = vld [vmem:[%s6 + $0x58] sm:$0xff]
      %v2039 = vld [vmem:[%s6 + $0x60] sm:$0xff]
      %v2040 = vld [vmem:[%s6 + $0x68] sm:$0xff]
      %v2041 = vld [vmem:[%s6 + $0x70] sm:$0xff]
      %v2042 = vld [vmem:[%s6 + $0x78] sm:$0xff]
      %v2043 = vld [vmem:[%s7] sm:$0x1]
      %v2045 = vperm.slane %v2043, 0
      %2047 = vmatpush.msra.mxu0 %v2042
      %2048 = vmatpush.msra.mxu0 %v2041
      %2049 = vmatpush.msra.mxu0 %v2040
      %2050 = vmatpush.msra.mxu0 %v2039
      %2051 = vmatpush.msra.mxu0 %v2038
      %2052 = vmatpush.msra.mxu0 %v2037
      %2053 = vmatpush.msra.mxu0 %v2036
      %2054 = vmatpush.msra.mxu0 %v2035
      %2055 = vmatpush.msra.mxu0 %v2034
      %2056 = vmatpush.msra.mxu0 %v2033
      %2057 = vmatpush.msra.mxu0 %v2032
      %2058 = vmatpush.msra.mxu0 %v2031
      %2059 = vmatpush.msra.mxu0 %v2030
      %2060 = vmatpush.msra.mxu0 %v2029
      %2061 = vmatpush.msra.mxu0 %v2028
      %2062 = vmatpush.msra.mxu0 %v2027
      %2063 = vmatmul.f32.gmra.mxu0 %v2010
      %v2064 = vpop.f32.mrf.mxu0
      %v2065 = vadd.f32 %v2045, %v2064
      %2066 = vmatmul.f32.gmra.mxu0 %v2011
      %v2067 = vpop.f32.mrf.mxu0
      %v2068 = vadd.f32 %v2045, %v2067
      %2069 = vmatmul.f32.gmra.mxu0 %v2012
      %v2070 = vpop.f32.mrf.mxu0
      %v2071 = vadd.f32 %v2045, %v2070
      %2072 = vmatmul.f32.gmra.mxu0 %v2013
      %v2073 = vpop.f32.mrf.mxu0
      %v2074 = vadd.f32 %v2045, %v2073
      %2075 = vmatmul.f32.gmra.mxu0 %v2014
      %v2076 = vpop.f32.mrf.mxu0
      %v2077 = vadd.f32 %v2045, %v2076
      %2078 = vmatmul.f32.gmra.mxu0 %v2015
      %v2079 = vpop.f32.mrf.mxu0
      %v2080 = vadd.f32 %v2045, %v2079
      %2081 = vmatmul.f32.gmra.mxu0 %v2016
      %v2082 = vpop.f32.mrf.mxu0
      %v2083 = vadd.f32 %v2045, %v2082
      %2084 = vmatmul.f32.gmra.mxu0 %v2017
      %v2085 = vpop.f32.mrf.mxu0
      %v2086 = vadd.f32 %v2045, %v2085
      %2087 = vmatmul.f32.gmra.mxu0 %v2018
      %v2088 = vpop.f32.mrf.mxu0
      %v2089 = vadd.f32 %v2045, %v2088
      %2090 = vmatmul.f32.gmra.mxu0 %v2019
      %v2091 = vpop.f32.mrf.mxu0
      %v2092 = vadd.f32 %v2045, %v2091
      %2093 = vmatmul.f32.gmra.mxu0 %v2020
      %v2094 = vpop.f32.mrf.mxu0
      %v2095 = vadd.f32 %v2045, %v2094
      %2096 = vmatmul.f32.gmra.mxu0 %v2021
      %v2097 = vpop.f32.mrf.mxu0
      %v2098 = vadd.f32 %v2045, %v2097
      %2099 = vmatmul.f32.gmra.mxu0 %v2022
      %v2100 = vpop.f32.mrf.mxu0
      %v2101 = vadd.f32 %v2045, %v2100
      %2102 = vmatmul.f32.gmra.mxu0 %v2023
      %v2103 = vpop.f32.mrf.mxu0
      %v2104 = vadd.f32 %v2045, %v2103
      %2105 = vmatmul.f32.gmra.mxu0 %v2024
      %v2106 = vpop.f32.mrf.mxu0
      %v2107 = vadd.f32 %v2045, %v2106
      %2108 = vmatmul.f32.gmra.mxu0 %v2025
      %v2109 = vpop.f32.mrf.mxu0
      %v2110 = vadd.f32 %v2045, %v2109
      %2111 = vmatmul.f32.gmra.mxu0 %v2026
      %v2112 = vpop.f32.mrf.mxu0
      %v2113 = vadd.f32 %v2045, %v2112
      %2114 = vdwg.mxu0
      %v2115 = vmax.f32 %v2065, 0.0
      %v2116 = vmax.f32 %v2068, 0.0
      %v2117 = vmax.f32 %v2071, 0.0
      %v2118 = vmax.f32 %v2074, 0.0
      %v2119 = vmax.f32 %v2077, 0.0
      %v2120 = vmax.f32 %v2080, 0.0
      %v2121 = vmax.f32 %v2083, 0.0
      %v2122 = vmax.f32 %v2086, 0.0
      %v2123 = vmax.f32 %v2089, 0.0
      %v2124 = vmax.f32 %v2092, 0.0
      %v2125 = vmax.f32 %v2095, 0.0
      %v2126 = vmax.f32 %v2098, 0.0
      %v2127 = vmax.f32 %v2101, 0.0
      %v2128 = vmax.f32 %v2104, 0.0
      %v2129 = vmax.f32 %v2107, 0.0
      %v2130 = vmax.f32 %v2110, 0.0
      %v2131 = vmax.f32 %v2113, 0.0
      %2132 = vst.msk [vmem:[%s361] sm:$0xff] %vm753, %v2115
      %2133 = vst.msk [vmem:[%s361 + $0x8] sm:$0xff] %vm753, %v2116
      %2134 = vst.msk [vmem:[%s361 + $0x10] sm:$0xff] %vm753, %v2117
      %2135 = vst.msk [vmem:[%s361 + $0x18] sm:$0xff] %vm753, %v2118
      %2136 = vst.msk [vmem:[%s361 + $0x20] sm:$0xff] %vm753, %v2119
      %2137 = vst.msk [vmem:[%s361 + $0x28] sm:$0xff] %vm753, %v2120
      %2138 = vst.msk [vmem:[%s361 + $0x30] sm:$0xff] %vm753, %v2121
      %2139 = vst.msk [vmem:[%s361 + $0x38] sm:$0xff] %vm753, %v2122
      %2140 = vst.msk [vmem:[%s361 + $0x40] sm:$0xff] %vm753, %v2123
      %2141 = vst.msk [vmem:[%s361 + $0x48] sm:$0xff] %vm753, %v2124
      %2142 = vst.msk [vmem:[%s361 + $0x50] sm:$0xff] %vm753, %v2125
      %2143 = vst.msk [vmem:[%s361 + $0x58] sm:$0xff] %vm753, %v2126
      %2144 = vst.msk [vmem:[%s361 + $0x60] sm:$0xff] %vm753, %v2127
      %2145 = vst.msk [vmem:[%s361 + $0x68] sm:$0xff] %vm753, %v2128
      %2146 = vst.msk [vmem:[%s361 + $0x70] sm:$0xff] %vm753, %v2129
      %2147 = vst.msk [vmem:[%s361 + $0x78] sm:$0xff] %vm753, %v2130
      %2148 = vst.msk [vmem:[%s361 + $0x80] sm:$0xff] %vm753, %v2131
      %p2149 = scmp.lt.s32.totalorder %s23, 1
      %s2150 = scalar_select %p2149, %s23, 1
      %p2151 = scmp.lt.s32.totalorder %s24, 1
      %s2152 = scalar_select %p2151, %s24, 1
      %s2153 = smul.addr %s2152, 17
      %s2154 = smul.addr %s2150, 34
      %s2155 = sadd.s32 %s2153, %s2154
      %s2156 = smul.addr %s2155, 8
      %s2157 = scalar_lea.vmem %s8, %s2156
      // Predicated region
      $region53: #{tpu_custom_call.1} parent=51 // pred_check
        %p2158 = pneg %p231
      $region54: #{tpu_custom_call.1} parent=51 // pred_check_branch
        %2160 = sbr.rel (%p2158) target = $region56
      $region55: #{tpu_custom_call.1} parent=51 // pred_region
        _
      $region56: #{tpu_custom_call.1} parent=51 // pred_fallthru
        _
    $region52: #{tpu_custom_call.1} parent=5 // pred_fallthru
      _
    %p2161 = scmp.le.s32.totalorder 2, %s14
    // Predicated region
    $region57: #{tpu_custom_call.1} parent=5 // pred_check
      %p2162 = pneg %p2161
    $region58: #{tpu_custom_call.1} parent=5 // pred_check_branch
      %2164 = sbr.rel (%p2162) target = $region60
    $region59: #{tpu_custom_call.1} parent=5 // pred_region
      %s2165 = ssub.s32 %s14, 2
      // Predicated region
      $region61: #{tpu_custom_call.1} parent=59 // pred_check
        %p2166 = pneg %p237
      $region62: #{tpu_custom_call.1} parent=59 // pred_check_branch
        %2168 = sbr.rel (%p2166) target = $region64
      $region63: #{tpu_custom_call.1} parent=59 // pred_region
        %p2169 = scmp.lt.s32.totalorder %s25, 1
        %s2170 = scalar_select %p2169, %s25, 1
        %p2171 = scmp.lt.s32.totalorder %s26, 1
        %s2172 = scalar_select %p2171, %s26, 1
        %s2173 = smul.addr %s2172, 17
        %s2174 = smul.addr %s2170, 34
        %s2175 = sadd.s32 %s2173, %s2174
        %s2176 = smul.addr %s2175, 8
        %s2177 = scalar_lea.vmem %s8, %s2176
      $region64: #{tpu_custom_call.1} parent=59 // pred_fallthru
        _
    $region60: #{tpu_custom_call.1} parent=5 // pred_fallthru
      _
  $region6: #{tpu_custom_call.1} parent=0 // loop_footer
    %s18 = sadd.s32 1, %s14
  $region7: #{tpu_custom_call.1} parent=0 // loop_footer_branch
    %13 = sbr.rel target = $region3
  $region8: #{tpu_custom_call.1} parent=0 // loop_exit
    _

</llo_original>
